<compile_context>
chip_gen: v6e
topology: v6e:2x2x1
jax: 0.10.0
libtpu: 0.0.40
codegen_flags: <defaults>
</compile_context>

<pallas_src>
import jax
import jax.numpy as jnp
from jax.experimental import pallas as pl
from jax.experimental.pallas import tpu as pltpu

_INV_SQRT2 = 0.7071067811865476
_LN_EPS = 1e-5


def _gelu_exact(x):
    # PyTorch nn.GELU() default = exact erf-based GELU.
    return 0.5 * x * (1.0 + jax.lax.erf(x * _INV_SQRT2))


def _layernorm_gelu(h, gamma, beta):
    mu = jnp.mean(h, axis=-1, keepdims=True)
    xc = h - mu
    var = jnp.mean(xc * xc, axis=-1, keepdims=True)
    h = xc * jax.lax.rsqrt(var + _LN_EPS)
    return _gelu_exact(h * gamma + beta)


def _make_kernel(num_layers):
    """Fused kernel for a fixed number of MLP layers (num_layers >= 2)."""

    def kernel(*refs):
        set_ref, item_ref, dc_ref = refs[:3]
        out_ref = refs[-1]
        params = refs[3:-1]

        s = set_ref[...].astype(jnp.float32)            # [b, E]
        it = item_ref[...].astype(jnp.float32)          # [b, E]

        # Per-row scalar statistics of the 2xE interaction matrix.
        ss = jnp.sum(s * s, axis=-1, keepdims=True)     # [b, 1]
        si = jnp.sum(s * it, axis=-1, keepdims=True)    # [b, 1]
        ii = jnp.sum(it * it, axis=-1, keepdims=True)   # [b, 1]
        s_sum = jnp.sum(s, axis=-1, keepdims=True)      # [b, 1]
        i_sum = jnp.sum(it, axis=-1, keepdims=True)     # [b, 1]

        dc = dc_ref[...]                                # [6, H1] fused rows
        # Fused (dot-compress interaction + first Linear + bias).
        h = (ss * dc[0:1, :] + si * dc[1:2, :] + ii * dc[2:3, :]
             + s_sum * dc[3:4, :] + i_sum * dc[4:5, :] + dc[5:6, :])  # [b, H1]

        idx = 0
        # LayerNorm + GELU that follows the (fused) first Linear.
        g_ref, be_ref = params[idx], params[idx + 1]
        idx += 2
        h = _layernorm_gelu(h, g_ref[...], be_ref[...])

        # Middle hidden layers: Linear -> LayerNorm -> GELU.
        for _ in range(1, num_layers - 1):
            w_ref, b_ref, g_ref, be_ref = params[idx:idx + 4]
            idx += 4
            h = jnp.dot(h, w_ref[...],
                        preferred_element_type=jnp.float32) + b_ref[...]
            h = _layernorm_gelu(h, g_ref[...], be_ref[...])

        # Final [H_last, 1] Linear as a VPU multiply + cross-lane reduction.
        w_last_ref, b_last_ref = params[idx], params[idx + 1]
        out = jnp.sum(h * w_last_ref[...], axis=-1, keepdims=True) + b_last_ref[...]
        out_ref[...] = out.astype(out_ref.dtype)

    return kernel


def dot_compress_scoring(set_emb, item_emb, dc_weight, dc_bias, mlp_params,
                         *, block_b=128):
    """Full forward pass in one batch-gridded Pallas kernel.

    mlp_params: list over layers; hidden layers are (W, b, gamma, beta),
                the final layer is (W, b).  W is [in_features, out_features],
                biases / LN params are [1, dim].
    """
    B, E = set_emb.shape
    num_layers = len(mlp_params)
    assert num_layers >= 2, "need at least one hidden layer"

    # ---- wrapper-side fusion of dot-compress + first Linear ---------------
    W0, b0, gamma0, beta0 = mlp_params[0]               # W0: [2*Dh, H1]
    Dh = W0.shape[0] // 2
    W0_top, W0_bot = W0[:Dh, :], W0[Dh:, :]
    w0 = dc_weight[0:1, :]                              # [1, Dh]
    w1 = dc_weight[1:2, :]                              # [1, Dh]
    bdc = dc_bias                                       # [1, Dh]
    r_ss = w0 @ W0_top
    r_si = w1 @ W0_top + w0 @ W0_bot
    r_ii = w1 @ W0_bot
    r_ssum = bdc @ W0_top
    r_isum = bdc @ W0_bot
    dc_rows = jnp.concatenate([r_ss, r_si, r_ii, r_ssum, r_isum, b0], axis=0)

    flat_params = [gamma0, beta0]
    for layer in range(1, num_layers - 1):
        W, b, g, be = mlp_params[layer]
        flat_params += [W, b, g, be]
    W_last, b_last = mlp_params[-1]                     # [H_last, 1], [1, 1]
    flat_params += [W_last.T, b_last]                   # row vector for VPU reduce

    # ---- grid / block choice ----------------------------------------------
    if B <= block_b:
        block_b = B                      # full-dim block is always legal
    else:
        block_b = max(8, (block_b // 8) * 8)   # sublane-aligned batch tile
    grid = (pl.cdiv(B, block_b),)

    batch_spec = pl.BlockSpec((block_b, E), lambda i: (i, 0))
    out_spec = pl.BlockSpec((block_b, 1), lambda i: (i, 0))

    def resident(shape):
        # Whole-array block, constant index_map -> fetched once, VMEM-resident.
        return pl.BlockSpec(shape, lambda i, n=len(shape): (0,) * n)

    in_specs = ([batch_spec, batch_spec, resident(dc_rows.shape)]
                + [resident(p.shape) for p in flat_params])

    return pl.pallas_call(
        _make_kernel(num_layers),
        out_shape=jax.ShapeDtypeStruct((B, 1), jnp.float32),
        grid=grid,
        in_specs=in_specs,
        out_specs=out_spec,
        compiler_params=pltpu.CompilerParams(
            dimension_semantics=("parallel",),
            vmem_limit_bytes=32 * 1024 * 1024),
    )(set_emb, item_emb, dc_rows, *flat_params)


# ---------------------------------------------------------------------------
# Pure-JAX reference (mirrors the PyTorch forward literally) for verification.
# ---------------------------------------------------------------------------
def reference_forward(set_emb, item_emb, dc_weight, dc_bias, mlp_params):
    A = jnp.stack([set_emb, item_emb], axis=1)                    # [B, 2, E]
    At = jnp.swapaxes(A, 1, 2)                                    # [B, E, 2]
    T = At @ dc_weight + dc_bias.reshape(1, 1, -1)                # [B, E, Dh]
    h = (A @ T).reshape(A.shape[0], -1)                           # [B, 2*Dh]
    num_layers = len(mlp_params)
    for layer, tup in enumerate(mlp_params):
        W, b = tup[0], tup[1]
        h = h @ W + b
        if layer < num_layers - 1:
            g, beta = tup[2], tup[3]
            mu = jnp.mean(h, axis=-1, keepdims=True)
            var = jnp.mean((h - mu) ** 2, axis=-1, keepdims=True)
            h = (h - mu) * jax.lax.rsqrt(var + _LN_EPS)
            h = h * g + beta
            h = jax.nn.gelu(h, approximate=False)
    return h


# ---------------------------------------------------------------------------
# Deterministic parameter construction (matches nn.Module shapes).
# ---------------------------------------------------------------------------
def init_params(key, input_dim, hidden_dims):
    half = input_dim // 2
    dims = [input_dim] + list(hidden_dims) + [1]

    k_dcw, key = jax.random.split(key)
    std = (2.0 / (2 + half)) ** 0.5                    # xavier_normal_ for (2, half)
    dc_weight = std * jax.random.normal(k_dcw, (2, half), dtype=jnp.float32)
    dc_bias = jnp.zeros((1, half), dtype=jnp.float32)

    mlp_params = []
    num_layers = len(dims) - 1
    for i in range(num_layers):
        fan_in, fan_out = dims[i], dims[i + 1]
        kw, kb, key = jax.random.split(key, 3)
        bound = 1.0 / (fan_in ** 0.5)
        W = jax.random.uniform(kw, (fan_in, fan_out), jnp.float32, -bound, bound)
        b = jax.random.uniform(kb, (1, fan_out), jnp.float32, -bound, bound)
        if i < num_layers - 1:
            gamma = jnp.ones((1, fan_out), dtype=jnp.float32)
            beta = jnp.zeros((1, fan_out), dtype=jnp.float32)
            mlp_params.append((W, b, gamma, beta))
        else:
            mlp_params.append((W, b))
    return dc_weight, dc_bias, mlp_params


if __name__ == "__main__":
    # input_dim = 32 -> embedding dim = 16; hidden_dims = [32, 16].
    # batch = 256 with block_b = 128 exercises a real 2-step batch grid while
    # staying small.
    batch, input_dim = 256, 32
    hidden_dims = [32, 16]
    emb_dim = input_dim // 2

    key = jax.random.PRNGKey(0)
    k_set, k_item, k_params = jax.random.split(key, 3)
    set_embeddings = jax.random.normal(k_set, (batch, emb_dim), dtype=jnp.float32)
    item_embeddings = jax.random.normal(k_item, (batch, emb_dim), dtype=jnp.float32)

    dc_weight, dc_bias, mlp_params = init_params(k_params, input_dim, hidden_dims)

    out = dot_compress_scoring(set_embeddings, item_embeddings,
                               dc_weight, dc_bias, mlp_params, block_b=128)
    out = jax.block_until_ready(out)

    ref = reference_forward(set_embeddings, item_embeddings,
                            dc_weight, dc_bias, mlp_params)
    assert out.shape == (batch, 1)
    assert jnp.allclose(out, ref, atol=1e-4, rtol=1e-4), (out, ref)

    print("KERNEL_OK")
</pallas_src>

<mosaic_0001>
module attributes {stable_mosaic.version = 11 : i64} {
  func.func @kernel(%arg0: i32, %arg1: memref<128x16xf32, #tpu.memory_space<vmem>>, %arg2: memref<128x16xf32, #tpu.memory_space<vmem>>, %arg3: memref<6x32xf32, #tpu.memory_space<vmem>>, %arg4: memref<1x32xf32, #tpu.memory_space<vmem>>, %arg5: memref<1x32xf32, #tpu.memory_space<vmem>>, %arg6: memref<32x16xf32, #tpu.memory_space<vmem>>, %arg7: memref<1x16xf32, #tpu.memory_space<vmem>>, %arg8: memref<1x16xf32, #tpu.memory_space<vmem>>, %arg9: memref<1x16xf32, #tpu.memory_space<vmem>>, %arg10: memref<1x16xf32, #tpu.memory_space<vmem>>, %arg11: memref<1x1xf32, #tpu.memory_space<vmem>>, %arg12: memref<128x1xf32, #tpu.memory_space<vmem>>) attributes {dimension_semantics = [#tpu.dimension_semantics<parallel>], iteration_bounds = array<i64: 2>, scalar_prefetch = 0 : i64, scratch_operands = 0 : i64, tpu.core_type = #tpu.core_type<tc>, window_params = [{transform_indices = @transform_0, window_bounds = array<i64: 128, 16>}, {transform_indices = @transform_1, window_bounds = array<i64: 128, 16>}, {pipeline_mode = #tpu.pipeline_mode<synchronous>, transform_indices = @transform_2, window_bounds = array<i64: 6, 32>}, {pipeline_mode = #tpu.pipeline_mode<synchronous>, transform_indices = @transform_3, window_bounds = array<i64: 1, 32>}, {pipeline_mode = #tpu.pipeline_mode<synchronous>, transform_indices = @transform_4, window_bounds = array<i64: 1, 32>}, {pipeline_mode = #tpu.pipeline_mode<synchronous>, transform_indices = @transform_5, window_bounds = array<i64: 32, 16>}, {pipeline_mode = #tpu.pipeline_mode<synchronous>, transform_indices = @transform_6, window_bounds = array<i64: 1, 16>}, {pipeline_mode = #tpu.pipeline_mode<synchronous>, transform_indices = @transform_7, window_bounds = array<i64: 1, 16>}, {pipeline_mode = #tpu.pipeline_mode<synchronous>, transform_indices = @transform_8, window_bounds = array<i64: 1, 16>}, {pipeline_mode = #tpu.pipeline_mode<synchronous>, transform_indices = @transform_9, window_bounds = array<i64: 1, 16>}, {pipeline_mode = #tpu.pipeline_mode<synchronous>, transform_indices = @transform_10, window_bounds = array<i64: 1, 1>}, {transform_indices = @transform_11, window_bounds = array<i64: 128, 1>}]} {
    %c0 = arith.constant 0 : index
    %c0_0 = arith.constant 0 : index
    %0 = vector.load %arg1[%c0, %c0_0] : memref<128x16xf32, #tpu.memory_space<vmem>>, vector<128x16xf32>
    %c0_1 = arith.constant 0 : index
    %c0_2 = arith.constant 0 : index
    %1 = vector.load %arg2[%c0_1, %c0_2] : memref<128x16xf32, #tpu.memory_space<vmem>>, vector<128x16xf32>
    %2 = arith.mulf %0, %0 : vector<128x16xf32>
    %cst = arith.constant dense<0.000000e+00> : vector<128xf32>
    %3 = vector.multi_reduction <add>, %2, %cst [1] : vector<128x16xf32> to vector<128xf32>
    %4 = vector.shape_cast %3 : vector<128xf32> to vector<128x1xf32>
    %5 = arith.mulf %0, %1 : vector<128x16xf32>
    %cst_3 = arith.constant dense<0.000000e+00> : vector<128xf32>
    %6 = vector.multi_reduction <add>, %5, %cst_3 [1] : vector<128x16xf32> to vector<128xf32>
    %7 = vector.shape_cast %6 : vector<128xf32> to vector<128x1xf32>
    %8 = arith.mulf %1, %1 : vector<128x16xf32>
    %cst_4 = arith.constant dense<0.000000e+00> : vector<128xf32>
    %9 = vector.multi_reduction <add>, %8, %cst_4 [1] : vector<128x16xf32> to vector<128xf32>
    %10 = vector.shape_cast %9 : vector<128xf32> to vector<128x1xf32>
    %cst_5 = arith.constant dense<0.000000e+00> : vector<128xf32>
    %11 = vector.multi_reduction <add>, %0, %cst_5 [1] : vector<128x16xf32> to vector<128xf32>
    %12 = vector.shape_cast %11 : vector<128xf32> to vector<128x1xf32>
    %cst_6 = arith.constant dense<0.000000e+00> : vector<128xf32>
    %13 = vector.multi_reduction <add>, %1, %cst_6 [1] : vector<128x16xf32> to vector<128xf32>
    %14 = vector.shape_cast %13 : vector<128xf32> to vector<128x1xf32>
    %c0_7 = arith.constant 0 : index
    %c0_8 = arith.constant 0 : index
    %15 = vector.load %arg3[%c0_7, %c0_8] : memref<6x32xf32, #tpu.memory_space<vmem>>, vector<6x32xf32>
    %16 = vector.extract_strided_slice %15 {offsets = [0, 0], sizes = [1, 32], strides = [1, 1]} : vector<6x32xf32> to vector<1x32xf32>
    %17 = vector.broadcast %4 : vector<128x1xf32> to vector<128x32xf32>
    %18 = vector.broadcast %16 : vector<1x32xf32> to vector<128x32xf32>
    %19 = arith.mulf %17, %18 : vector<128x32xf32>
    %20 = vector.extract_strided_slice %15 {offsets = [1, 0], sizes = [1, 32], strides = [1, 1]} : vector<6x32xf32> to vector<1x32xf32>
    %21 = vector.broadcast %7 : vector<128x1xf32> to vector<128x32xf32>
    %22 = vector.broadcast %20 : vector<1x32xf32> to vector<128x32xf32>
    %23 = arith.mulf %21, %22 : vector<128x32xf32>
    %24 = arith.addf %19, %23 : vector<128x32xf32>
    %25 = vector.extract_strided_slice %15 {offsets = [2, 0], sizes = [1, 32], strides = [1, 1]} : vector<6x32xf32> to vector<1x32xf32>
    %26 = vector.broadcast %10 : vector<128x1xf32> to vector<128x32xf32>
    %27 = vector.broadcast %25 : vector<1x32xf32> to vector<128x32xf32>
    %28 = arith.mulf %26, %27 : vector<128x32xf32>
    %29 = arith.addf %24, %28 : vector<128x32xf32>
    %30 = vector.extract_strided_slice %15 {offsets = [3, 0], sizes = [1, 32], strides = [1, 1]} : vector<6x32xf32> to vector<1x32xf32>
    %31 = vector.broadcast %12 : vector<128x1xf32> to vector<128x32xf32>
    %32 = vector.broadcast %30 : vector<1x32xf32> to vector<128x32xf32>
    %33 = arith.mulf %31, %32 : vector<128x32xf32>
    %34 = arith.addf %29, %33 : vector<128x32xf32>
    %35 = vector.extract_strided_slice %15 {offsets = [4, 0], sizes = [1, 32], strides = [1, 1]} : vector<6x32xf32> to vector<1x32xf32>
    %36 = vector.broadcast %14 : vector<128x1xf32> to vector<128x32xf32>
    %37 = vector.broadcast %35 : vector<1x32xf32> to vector<128x32xf32>
    %38 = arith.mulf %36, %37 : vector<128x32xf32>
    %39 = arith.addf %34, %38 : vector<128x32xf32>
    %40 = vector.extract_strided_slice %15 {offsets = [5, 0], sizes = [1, 32], strides = [1, 1]} : vector<6x32xf32> to vector<1x32xf32>
    %41 = vector.broadcast %40 : vector<1x32xf32> to vector<128x32xf32>
    %42 = arith.addf %39, %41 : vector<128x32xf32>
    %c0_9 = arith.constant 0 : index
    %c0_10 = arith.constant 0 : index
    %43 = vector.load %arg4[%c0_9, %c0_10] : memref<1x32xf32, #tpu.memory_space<vmem>>, vector<1x32xf32>
    %c0_11 = arith.constant 0 : index
    %c0_12 = arith.constant 0 : index
    %44 = vector.load %arg5[%c0_11, %c0_12] : memref<1x32xf32, #tpu.memory_space<vmem>>, vector<1x32xf32>
    %cst_13 = arith.constant dense<0.000000e+00> : vector<128xf32>
    %45 = vector.multi_reduction <add>, %42, %cst_13 [1] : vector<128x32xf32> to vector<128xf32>
    %46 = vector.shape_cast %45 : vector<128xf32> to vector<128x1xf32>
    %cst_14 = arith.constant 3.200000e+01 : f32
    %47 = vector.broadcast %cst_14 : f32 to vector<128x1xf32>
    %48 = arith.divf %46, %47 : vector<128x1xf32>
    %49 = vector.broadcast %48 : vector<128x1xf32> to vector<128x32xf32>
    %50 = arith.subf %42, %49 : vector<128x32xf32>
    %51 = arith.mulf %50, %50 : vector<128x32xf32>
    %cst_15 = arith.constant dense<0.000000e+00> : vector<128xf32>
    %52 = vector.multi_reduction <add>, %51, %cst_15 [1] : vector<128x32xf32> to vector<128xf32>
    %53 = vector.shape_cast %52 : vector<128xf32> to vector<128x1xf32>
    %cst_16 = arith.constant 3.200000e+01 : f32
    %54 = vector.broadcast %cst_16 : f32 to vector<128x1xf32>
    %55 = arith.divf %53, %54 : vector<128x1xf32>
    %cst_17 = arith.constant 9.99999974E-6 : f32
    %56 = vector.broadcast %cst_17 : f32 to vector<128x1xf32>
    %57 = arith.addf %55, %56 : vector<128x1xf32>
    %58 = math.rsqrt %57 : vector<128x1xf32>
    %59 = vector.broadcast %58 : vector<128x1xf32> to vector<128x32xf32>
    %60 = arith.mulf %50, %59 : vector<128x32xf32>
    %61 = vector.broadcast %43 : vector<1x32xf32> to vector<128x32xf32>
    %62 = arith.mulf %60, %61 : vector<128x32xf32>
    %63 = vector.broadcast %44 : vector<1x32xf32> to vector<128x32xf32>
    %64 = arith.addf %62, %63 : vector<128x32xf32>
    %cst_18 = arith.constant 5.000000e-01 : f32
    %65 = vector.broadcast %cst_18 : f32 to vector<128x32xf32>
    %66 = arith.mulf %65, %64 : vector<128x32xf32>
    %cst_19 = arith.constant 0.707106769 : f32
    %67 = vector.broadcast %cst_19 : f32 to vector<128x32xf32>
    %68 = arith.mulf %64, %67 : vector<128x32xf32>
    %69 = math.erf %68 : vector<128x32xf32>
    %cst_20 = arith.constant 1.000000e+00 : f32
    %70 = vector.broadcast %cst_20 : f32 to vector<128x32xf32>
    %71 = arith.addf %70, %69 : vector<128x32xf32>
    %72 = arith.mulf %66, %71 : vector<128x32xf32>
    %c0_21 = arith.constant 0 : index
    %c0_22 = arith.constant 0 : index
    %73 = vector.load %arg6[%c0_21, %c0_22] : memref<32x16xf32, #tpu.memory_space<vmem>>, vector<32x16xf32>
    %cst_23 = arith.constant dense<0.000000e+00> : vector<128x16xf32>
    %74 = tpu.matmul %72, %73, %cst_23 {dimension_numbers = #tpu.dot_dimension_numbers<[1], [0], [0], [1], [0, 0, 1, 1], [], []>} : vector<128x32xf32>, vector<32x16xf32>, vector<128x16xf32> -> vector<128x16xf32>
    %c0_24 = arith.constant 0 : index
    %c0_25 = arith.constant 0 : index
    %75 = vector.load %arg7[%c0_24, %c0_25] : memref<1x16xf32, #tpu.memory_space<vmem>>, vector<1x16xf32>
    %76 = vector.broadcast %75 : vector<1x16xf32> to vector<128x16xf32>
    %77 = arith.addf %74, %76 : vector<128x16xf32>
    %c0_26 = arith.constant 0 : index
    %c0_27 = arith.constant 0 : index
    %78 = vector.load %arg8[%c0_26, %c0_27] : memref<1x16xf32, #tpu.memory_space<vmem>>, vector<1x16xf32>
    %c0_28 = arith.constant 0 : index
    %c0_29 = arith.constant 0 : index
    %79 = vector.load %arg9[%c0_28, %c0_29] : memref<1x16xf32, #tpu.memory_space<vmem>>, vector<1x16xf32>
    %cst_30 = arith.constant dense<0.000000e+00> : vector<128xf32>
    %80 = vector.multi_reduction <add>, %77, %cst_30 [1] : vector<128x16xf32> to vector<128xf32>
    %81 = vector.shape_cast %80 : vector<128xf32> to vector<128x1xf32>
    %cst_31 = arith.constant 1.600000e+01 : f32
    %82 = vector.broadcast %cst_31 : f32 to vector<128x1xf32>
    %83 = arith.divf %81, %82 : vector<128x1xf32>
    %84 = vector.broadcast %83 : vector<128x1xf32> to vector<128x16xf32>
    %85 = arith.subf %77, %84 : vector<128x16xf32>
    %86 = arith.mulf %85, %85 : vector<128x16xf32>
    %cst_32 = arith.constant dense<0.000000e+00> : vector<128xf32>
    %87 = vector.multi_reduction <add>, %86, %cst_32 [1] : vector<128x16xf32> to vector<128xf32>
    %88 = vector.shape_cast %87 : vector<128xf32> to vector<128x1xf32>
    %cst_33 = arith.constant 1.600000e+01 : f32
    %89 = vector.broadcast %cst_33 : f32 to vector<128x1xf32>
    %90 = arith.divf %88, %89 : vector<128x1xf32>
    %cst_34 = arith.constant 9.99999974E-6 : f32
    %91 = vector.broadcast %cst_34 : f32 to vector<128x1xf32>
    %92 = arith.addf %90, %91 : vector<128x1xf32>
    %93 = math.rsqrt %92 : vector<128x1xf32>
    %94 = vector.broadcast %93 : vector<128x1xf32> to vector<128x16xf32>
    %95 = arith.mulf %85, %94 : vector<128x16xf32>
    %96 = vector.broadcast %78 : vector<1x16xf32> to vector<128x16xf32>
    %97 = arith.mulf %95, %96 : vector<128x16xf32>
    %98 = vector.broadcast %79 : vector<1x16xf32> to vector<128x16xf32>
    %99 = arith.addf %97, %98 : vector<128x16xf32>
    %cst_35 = arith.constant 5.000000e-01 : f32
    %100 = vector.broadcast %cst_35 : f32 to vector<128x16xf32>
    %101 = arith.mulf %100, %99 : vector<128x16xf32>
    %cst_36 = arith.constant 0.707106769 : f32
    %102 = vector.broadcast %cst_36 : f32 to vector<128x16xf32>
    %103 = arith.mulf %99, %102 : vector<128x16xf32>
    %104 = math.erf %103 : vector<128x16xf32>
    %cst_37 = arith.constant 1.000000e+00 : f32
    %105 = vector.broadcast %cst_37 : f32 to vector<128x16xf32>
    %106 = arith.addf %105, %104 : vector<128x16xf32>
    %107 = arith.mulf %101, %106 : vector<128x16xf32>
    %c0_38 = arith.constant 0 : index
    %c0_39 = arith.constant 0 : index
    %108 = vector.load %arg10[%c0_38, %c0_39] : memref<1x16xf32, #tpu.memory_space<vmem>>, vector<1x16xf32>
    %109 = vector.broadcast %108 : vector<1x16xf32> to vector<128x16xf32>
    %110 = arith.mulf %107, %109 : vector<128x16xf32>
    %cst_40 = arith.constant dense<0.000000e+00> : vector<128xf32>
    %111 = vector.multi_reduction <add>, %110, %cst_40 [1] : vector<128x16xf32> to vector<128xf32>
    %112 = vector.shape_cast %111 : vector<128xf32> to vector<128x1xf32>
    %c0_41 = arith.constant 0 : index
    %c0_42 = arith.constant 0 : index
    %113 = vector.load %arg11[%c0_41, %c0_42] : memref<1x1xf32, #tpu.memory_space<vmem>>, vector<1x1xf32>
    %114 = vector.broadcast %113 : vector<1x1xf32> to vector<128x1xf32>
    %115 = arith.addf %112, %114 : vector<128x1xf32>
    %c0_43 = arith.constant 0 : index
    %c0_44 = arith.constant 0 : index
    %116 = vector.load %arg12[%c0_43, %c0_44] : memref<128x1xf32, #tpu.memory_space<vmem>>, vector<128x1xf32>
    tpu.vector_store %arg12[%c0_43, %c0_44], %115 {strides = array<i32>} : memref<128x1xf32, #tpu.memory_space<vmem>>, vector<128x1xf32>,
    return
  }
  func.func @transform_0(%arg0: i32) -> (i32, i32) {
    %c0_i32 = arith.constant 0 : i32
    %c0_i32_0 = arith.constant 0 : i32
    return %arg0, %c0_i32 : i32, i32
  }
  func.func @transform_1(%arg0: i32) -> (i32, i32) {
    %c0_i32 = arith.constant 0 : i32
    %c0_i32_0 = arith.constant 0 : i32
    return %arg0, %c0_i32 : i32, i32
  }
  func.func @transform_2(%arg0: i32) -> (i32, i32) {
    %c0_i32 = arith.constant 0 : i32
    %c0_i32_0 = arith.constant 0 : i32
    %c0_i32_1 = arith.constant 0 : i32
    return %c0_i32, %c0_i32_0 : i32, i32
  }
  func.func @transform_3(%arg0: i32) -> (i32, i32) {
    %c0_i32 = arith.constant 0 : i32
    %c0_i32_0 = arith.constant 0 : i32
    %c0_i32_1 = arith.constant 0 : i32
    return %c0_i32, %c0_i32_0 : i32, i32
  }
  func.func @transform_4(%arg0: i32) -> (i32, i32) {
    %c0_i32 = arith.constant 0 : i32
    %c0_i32_0 = arith.constant 0 : i32
    %c0_i32_1 = arith.constant 0 : i32
    return %c0_i32, %c0_i32_0 : i32, i32
  }
  func.func @transform_5(%arg0: i32) -> (i32, i32) {
    %c0_i32 = arith.constant 0 : i32
    %c0_i32_0 = arith.constant 0 : i32
    %c0_i32_1 = arith.constant 0 : i32
    return %c0_i32, %c0_i32_0 : i32, i32
  }
  func.func @transform_6(%arg0: i32) -> (i32, i32) {
    %c0_i32 = arith.constant 0 : i32
    %c0_i32_0 = arith.constant 0 : i32
    %c0_i32_1 = arith.constant 0 : i32
    return %c0_i32, %c0_i32_0 : i32, i32
  }
  func.func @transform_7(%arg0: i32) -> (i32, i32) {
    %c0_i32 = arith.constant 0 : i32
    %c0_i32_0 = arith.constant 0 : i32
    %c0_i32_1 = arith.constant 0 : i32
    return %c0_i32, %c0_i32_0 : i32, i32
  }
  func.func @transform_8(%arg0: i32) -> (i32, i32) {
    %c0_i32 = arith.constant 0 : i32
    %c0_i32_0 = arith.constant 0 : i32
    %c0_i32_1 = arith.constant 0 : i32
    return %c0_i32, %c0_i32_0 : i32, i32
  }
  func.func @transform_9(%arg0: i32) -> (i32, i32) {
    %c0_i32 = arith.constant 0 : i32
    %c0_i32_0 = arith.constant 0 : i32
    %c0_i32_1 = arith.constant 0 : i32
    return %c0_i32, %c0_i32_0 : i32, i32
  }
  func.func @transform_10(%arg0: i32) -> (i32, i32) {
    %c0_i32 = arith.constant 0 : i32
    %c0_i32_0 = arith.constant 0 : i32
    %c0_i32_1 = arith.constant 0 : i32
    return %c0_i32, %c0_i32_0 : i32, i32
  }
  func.func @transform_11(%arg0: i32) -> (i32, i32) {
    %c0_i32 = arith.constant 0 : i32
    %c0_i32_0 = arith.constant 0 : i32
    return %arg0, %c0_i32 : i32, i32
  }
}

</mosaic_0001>

<llo_original>
// kernel: tpu_custom_call.1
$region0: #{tpu_custom_call.1}
  #allocation0 [shape = 'u32[]', space=smem, size = 0x4, offset = 0x4, fixed_abs, tag = 'smem constant byte address 0x4 - core index']
  #allocation1 [shape = 'u32[144,128]{1,0:T(1,128)}', space=vmem, size = 0x12000, scoped, tag = 'internal scratch']
  #allocation2 [shape = 'f32[1,1]{1,0:T(1,128)S(1)}', space=vmem, size = 0x200, scoped, tag = 'scoped memory for tpu_custom_call.1']
  %s0 = inlined_call_operand.vmem [shape: f32[256,16], index: 0, kind: input, shape index: {}]
  %s1 = inlined_call_operand.vmem [shape: f32[256,16], index: 1, kind: input, shape index: {}]
  %s2 = inlined_call_operand.vmem [shape: f32[6,32], index: 2, kind: input, shape index: {}]
  %s3 = inlined_call_operand.vmem [shape: f32[1,32], index: 3, kind: input, shape index: {}]
  %s4 = inlined_call_operand.vmem [shape: f32[1,32], index: 4, kind: input, shape index: {}]
  %s5 = inlined_call_operand.vmem [shape: f32[32,16], index: 5, kind: input, shape index: {}]
  %s6 = inlined_call_operand.vmem [shape: f32[1,16], index: 6, kind: input, shape index: {}]
  %s7 = inlined_call_operand.vmem [shape: f32[1,16], index: 7, kind: input, shape index: {}]
  %s8 = inlined_call_operand.vmem [shape: f32[1,16], index: 8, kind: input, shape index: {}]
  %s9 = inlined_call_operand.vmem [shape: f32[1,16], index: 9, kind: input, shape index: {}]
  %s10 = inlined_call_operand.<no memory space> [shape: f32[1,1], index: 10, kind: input, shape index: {}]
  %s11 = inlined_call_operand.vmem [shape: f32[256,1], index: 11, kind: output, shape index: {}]
  %s12 = sld [smem:[#allocation0]]
  $region77: #{tpu_custom_call.1} parent=0
    _
  %s14 = ssub.s32 1, %s12
  %s15 = scalar_select 0, %s14, %s12
  %v16 = vstv %s10
  %17 = vst [vmem:[#allocation2] sm:$0x1] %v16
  loop: start=0, step=1, limit=4
  $region2: #{tpu_custom_call.1} parent=0 // loop_pre_header
    _
  $region3: #{tpu_custom_call.1} parent=0 // loop_header
    %s19 = sphi 0, %s23
    %p20 = scmp.ge.s32.totalorder %s19, 4
    %s29 = sphi 0, %s31
    %s32 = sphi 0, %s29
    %s33 = sphi 0, %s32
    %s49 = sphi 0, %s33
    %s55 = sphi 0, %s57
    %s58 = sphi 0, %s55
    %s59 = sphi 0, %s58
    %s75 = sphi 0, %s59
    %s79 = sphi 0, %s79
    %s81 = sphi 0, %s79
    %s82 = sphi 0, %s81
    %s96 = sphi 0, %s82
    %s100 = sphi 0, %s100
    %s102 = sphi 0, %s100
    %s103 = sphi 0, %s102
    %s117 = sphi 0, %s103
    %s121 = sphi 0, %s121
    %s123 = sphi 0, %s121
    %s124 = sphi 0, %s123
    %s138 = sphi 0, %s124
    %s142 = sphi 0, %s142
    %s144 = sphi 0, %s142
    %s145 = sphi 0, %s144
    %s159 = sphi 0, %s145
    %s163 = sphi 0, %s163
    %s165 = sphi 0, %s163
    %s166 = sphi 0, %s165
    %s180 = sphi 0, %s166
    %s184 = sphi 0, %s184
    %s186 = sphi 0, %s184
    %s187 = sphi 0, %s186
    %s201 = sphi 0, %s187
    %s205 = sphi 0, %s205
    %s207 = sphi 0, %s205
    %s208 = sphi 0, %s207
    %s222 = sphi 0, %s208
    %s226 = sphi 0, %s226
    %s228 = sphi 0, %s226
    %s229 = sphi 0, %s228
    %s243 = sphi 0, %s229
    %s247 = sphi 0, %s247
    %s249 = sphi 0, %s247
    %s250 = sphi 0, %s249
    %s264 = sphi 0, %s250
    %s270 = sphi 0, %s272
    %s273 = sphi 0, %s270
    %s274 = sphi 0, %s273
    %s290 = sphi 0, %s274
  $region4: #{tpu_custom_call.1} parent=0 // loop_header_branch
    %22 = sbr.rel (%p20) target = $region8
  $region5: #{tpu_custom_call.1} parent=0 // loop_body
    %s24 = ssub.s32 %s19, 1
    %s25 = ssub.s32 %s19, 2
    %s26 = sadd.s32 %s19, 1
    %s27 = ssub.s32 %s19, %s26
    %p28 = scmp.eq.s32.totalorder %s27, 0
    %s30 = sadd.s32 %s29, 1
    %s31 = scalar_select %p28, %s29, %s30
    %p34 = pneg %p28
    %p35 = scmp.eq.s32.totalorder %s19, 1
    %p36 = por %p34, %p35
    %p37 = scmp.ne.s32.totalorder %s29, %s32
    %p38 = scmp.eq.s32.totalorder %s19, 0
    %p39 = por %p37, %p38
    %p40 = scmp.ne.s32.totalorder %s29, %s32
    %p41 = scmp.eq.s32.totalorder %s24, 1
    %p42 = por %p40, %p41
    %p43 = scmp.ne.s32.totalorder %s32, %s33
    %p44 = scmp.eq.s32.totalorder %s24, 0
    %p45 = por %p43, %p44
    %p46 = scmp.ne.s32.totalorder %s32, %s33
    %p47 = scmp.eq.s32.totalorder %s25, 1
    %p48 = por %p46, %p47
    %p50 = scmp.ne.s32.totalorder %s33, %s49
    %p51 = scmp.eq.s32.totalorder %s25, 0
    %p52 = por %p50, %p51
    %s53 = ssub.s32 %s19, %s26
    %p54 = scmp.eq.s32.totalorder %s53, 0
    %s56 = sadd.s32 %s55, 1
    %s57 = scalar_select %p54, %s55, %s56
    %p60 = pneg %p54
    %p61 = scmp.eq.s32.totalorder %s19, 1
    %p62 = por %p60, %p61
    %p63 = scmp.ne.s32.totalorder %s55, %s58
    %p64 = scmp.eq.s32.totalorder %s19, 0
    %p65 = por %p63, %p64
    %p66 = scmp.ne.s32.totalorder %s55, %s58
    %p67 = scmp.eq.s32.totalorder %s24, 1
    %p68 = por %p66, %p67
    %p69 = scmp.ne.s32.totalorder %s58, %s59
    %p70 = scmp.eq.s32.totalorder %s24, 0
    %p71 = por %p69, %p70
    %p72 = scmp.ne.s32.totalorder %s58, %s59
    %p73 = scmp.eq.s32.totalorder %s25, 1
    %p74 = por %p72, %p73
    %p76 = scmp.ne.s32.totalorder %s59, %s75
    %p77 = scmp.eq.s32.totalorder %s25, 0
    %p78 = por %p76, %p77
    %s80 = sadd.s32 %s79, 1
    %p83 = scmp.eq.s32.totalorder %s19, 1
    %p84 = scmp.ne.s32.totalorder %s79, %s81
    %p85 = scmp.eq.s32.totalorder %s19, 0
    %p86 = por %p84, %p85
    %p87 = scmp.ne.s32.totalorder %s79, %s81
    %p88 = scmp.eq.s32.totalorder %s24, 1
    %p89 = por %p87, %p88
    %p90 = scmp.ne.s32.totalorder %s81, %s82
    %p91 = scmp.eq.s32.totalorder %s24, 0
    %p92 = por %p90, %p91
    %p93 = scmp.ne.s32.totalorder %s81, %s82
    %p94 = scmp.eq.s32.totalorder %s25, 1
    %p95 = por %p93, %p94
    %p97 = scmp.ne.s32.totalorder %s82, %s96
    %p98 = scmp.eq.s32.totalorder %s25, 0
    %p99 = por %p97, %p98
    %s101 = sadd.s32 %s100, 1
    %p104 = scmp.eq.s32.totalorder %s19, 1
    %p105 = scmp.ne.s32.totalorder %s100, %s102
    %p106 = scmp.eq.s32.totalorder %s19, 0
    %p107 = por %p105, %p106
    %p108 = scmp.ne.s32.totalorder %s100, %s102
    %p109 = scmp.eq.s32.totalorder %s24, 1
    %p110 = por %p108, %p109
    %p111 = scmp.ne.s32.totalorder %s102, %s103
    %p112 = scmp.eq.s32.totalorder %s24, 0
    %p113 = por %p111, %p112
    %p114 = scmp.ne.s32.totalorder %s102, %s103
    %p115 = scmp.eq.s32.totalorder %s25, 1
    %p116 = por %p114, %p115
    %p118 = scmp.ne.s32.totalorder %s103, %s117
    %p119 = scmp.eq.s32.totalorder %s25, 0
    %p120 = por %p118, %p119
    %s122 = sadd.s32 %s121, 1
    %p125 = scmp.eq.s32.totalorder %s19, 1
    %p126 = scmp.ne.s32.totalorder %s121, %s123
    %p127 = scmp.eq.s32.totalorder %s19, 0
    %p128 = por %p126, %p127
    %p129 = scmp.ne.s32.totalorder %s121, %s123
    %p130 = scmp.eq.s32.totalorder %s24, 1
    %p131 = por %p129, %p130
    %p132 = scmp.ne.s32.totalorder %s123, %s124
    %p133 = scmp.eq.s32.totalorder %s24, 0
    %p134 = por %p132, %p133
    %p135 = scmp.ne.s32.totalorder %s123, %s124
    %p136 = scmp.eq.s32.totalorder %s25, 1
    %p137 = por %p135, %p136
    %p139 = scmp.ne.s32.totalorder %s124, %s138
    %p140 = scmp.eq.s32.totalorder %s25, 0
    %p141 = por %p139, %p140
    %s143 = sadd.s32 %s142, 1
    %p146 = scmp.eq.s32.totalorder %s19, 1
    %p147 = scmp.ne.s32.totalorder %s142, %s144
    %p148 = scmp.eq.s32.totalorder %s19, 0
    %p149 = por %p147, %p148
    %p150 = scmp.ne.s32.totalorder %s142, %s144
    %p151 = scmp.eq.s32.totalorder %s24, 1
    %p152 = por %p150, %p151
    %p153 = scmp.ne.s32.totalorder %s144, %s145
    %p154 = scmp.eq.s32.totalorder %s24, 0
    %p155 = por %p153, %p154
    %p156 = scmp.ne.s32.totalorder %s144, %s145
    %p157 = scmp.eq.s32.totalorder %s25, 1
    %p158 = por %p156, %p157
    %p160 = scmp.ne.s32.totalorder %s145, %s159
    %p161 = scmp.eq.s32.totalorder %s25, 0
    %p162 = por %p160, %p161
    %s164 = sadd.s32 %s163, 1
    %p167 = scmp.eq.s32.totalorder %s19, 1
    %p168 = scmp.ne.s32.totalorder %s163, %s165
    %p169 = scmp.eq.s32.totalorder %s19, 0
    %p170 = por %p168, %p169
    %p171 = scmp.ne.s32.totalorder %s163, %s165
    %p172 = scmp.eq.s32.totalorder %s24, 1
    %p173 = por %p171, %p172
    %p174 = scmp.ne.s32.totalorder %s165, %s166
    %p175 = scmp.eq.s32.totalorder %s24, 0
    %p176 = por %p174, %p175
    %p177 = scmp.ne.s32.totalorder %s165, %s166
    %p178 = scmp.eq.s32.totalorder %s25, 1
    %p179 = por %p177, %p178
    %p181 = scmp.ne.s32.totalorder %s166, %s180
    %p182 = scmp.eq.s32.totalorder %s25, 0
    %p183 = por %p181, %p182
    %s185 = sadd.s32 %s184, 1
    %p188 = scmp.eq.s32.totalorder %s19, 1
    %p189 = scmp.ne.s32.totalorder %s184, %s186
    %p190 = scmp.eq.s32.totalorder %s19, 0
    %p191 = por %p189, %p190
    %p192 = scmp.ne.s32.totalorder %s184, %s186
    %p193 = scmp.eq.s32.totalorder %s24, 1
    %p194 = por %p192, %p193
    %p195 = scmp.ne.s32.totalorder %s186, %s187
    %p196 = scmp.eq.s32.totalorder %s24, 0
    %p197 = por %p195, %p196
    %p198 = scmp.ne.s32.totalorder %s186, %s187
    %p199 = scmp.eq.s32.totalorder %s25, 1
    %p200 = por %p198, %p199
    %p202 = scmp.ne.s32.totalorder %s187, %s201
    %p203 = scmp.eq.s32.totalorder %s25, 0
    %p204 = por %p202, %p203
    %s206 = sadd.s32 %s205, 1
    %p209 = scmp.eq.s32.totalorder %s19, 1
    %p210 = scmp.ne.s32.totalorder %s205, %s207
    %p211 = scmp.eq.s32.totalorder %s19, 0
    %p212 = por %p210, %p211
    %p213 = scmp.ne.s32.totalorder %s205, %s207
    %p214 = scmp.eq.s32.totalorder %s24, 1
    %p215 = por %p213, %p214
    %p216 = scmp.ne.s32.totalorder %s207, %s208
    %p217 = scmp.eq.s32.totalorder %s24, 0
    %p218 = por %p216, %p217
    %p219 = scmp.ne.s32.totalorder %s207, %s208
    %p220 = scmp.eq.s32.totalorder %s25, 1
    %p221 = por %p219, %p220
    %p223 = scmp.ne.s32.totalorder %s208, %s222
    %p224 = scmp.eq.s32.totalorder %s25, 0
    %p225 = por %p223, %p224
    %s227 = sadd.s32 %s226, 1
    %p230 = scmp.eq.s32.totalorder %s19, 1
    %p231 = scmp.ne.s32.totalorder %s226, %s228
    %p232 = scmp.eq.s32.totalorder %s19, 0
    %p233 = por %p231, %p232
    %p234 = scmp.ne.s32.totalorder %s226, %s228
    %p235 = scmp.eq.s32.totalorder %s24, 1
    %p236 = por %p234, %p235
    %p237 = scmp.ne.s32.totalorder %s228, %s229
    %p238 = scmp.eq.s32.totalorder %s24, 0
    %p239 = por %p237, %p238
    %p240 = scmp.ne.s32.totalorder %s228, %s229
    %p241 = scmp.eq.s32.totalorder %s25, 1
    %p242 = por %p240, %p241
    %p244 = scmp.ne.s32.totalorder %s229, %s243
    %p245 = scmp.eq.s32.totalorder %s25, 0
    %p246 = por %p244, %p245
    %s248 = sadd.s32 %s247, 1
    %p251 = scmp.eq.s32.totalorder %s19, 1
    %p252 = scmp.ne.s32.totalorder %s247, %s249
    %p253 = scmp.eq.s32.totalorder %s19, 0
    %p254 = por %p252, %p253
    %p255 = scmp.ne.s32.totalorder %s247, %s249
    %p256 = scmp.eq.s32.totalorder %s24, 1
    %p257 = por %p255, %p256
    %p258 = scmp.ne.s32.totalorder %s249, %s250
    %p259 = scmp.eq.s32.totalorder %s24, 0
    %p260 = por %p258, %p259
    %p261 = scmp.ne.s32.totalorder %s249, %s250
    %p262 = scmp.eq.s32.totalorder %s25, 1
    %p263 = por %p261, %p262
    %p265 = scmp.ne.s32.totalorder %s250, %s264
    %p266 = scmp.eq.s32.totalorder %s25, 0
    %p267 = por %p265, %p266
    %s268 = ssub.s32 %s19, %s26
    %p269 = scmp.eq.s32.totalorder %s268, 0
    %s271 = sadd.s32 %s270, 1
    %s272 = scalar_select %p269, %s270, %s271
    %p275 = pneg %p269
    %p276 = scmp.eq.s32.totalorder %s19, 1
    %p277 = por %p275, %p276
    %p278 = scmp.ne.s32.totalorder %s270, %s273
    %p279 = scmp.eq.s32.totalorder %s19, 0
    %p280 = por %p278, %p279
    %p281 = scmp.ne.s32.totalorder %s270, %s273
    %p282 = scmp.eq.s32.totalorder %s24, 1
    %p283 = por %p281, %p282
    %p284 = scmp.ne.s32.totalorder %s273, %s274
    %p285 = scmp.eq.s32.totalorder %s24, 0
    %p286 = por %p284, %p285
    %p287 = scmp.ne.s32.totalorder %s273, %s274
    %p288 = scmp.eq.s32.totalorder %s25, 1
    %p289 = por %p287, %p288
    %p291 = scmp.ne.s32.totalorder %s274, %s290
    %p292 = scmp.eq.s32.totalorder %s25, 0
    %p293 = por %p291, %p292
    %p294 = scmp.le.s32.totalorder 1, %s19
    %p295 = scmp.lt.s32.totalorder %s19, 3
    %p296 = pnand %p294, %p295
    %p297 = pneg %p296
    // Predicated region
    $region9: #{tpu_custom_call.1} parent=5 // pred_check
      _
    $region10: #{tpu_custom_call.1} parent=5 // pred_check_branch
      %299 = sbr.rel (%p296) target = $region12
    $region11: #{tpu_custom_call.1} parent=5 // pred_region
      %s300 = ssub.s32 %s19, 1
      // Predicated region
      $region13: #{tpu_custom_call.1} parent=11 // pred_check
        %p301 = pneg %p92
      $region14: #{tpu_custom_call.1} parent=11 // pred_check_branch
        %303 = sbr.rel (%p301) target = $region16
      $region15: #{tpu_custom_call.1} parent=11 // pred_region
        _
      $region16: #{tpu_custom_call.1} parent=11 // pred_fallthru
        _
      // Predicated region
      $region17: #{tpu_custom_call.1} parent=11 // pred_check
        %p304 = pneg %p113
      $region18: #{tpu_custom_call.1} parent=11 // pred_check_branch
        %306 = sbr.rel (%p304) target = $region20
      $region19: #{tpu_custom_call.1} parent=11 // pred_region
        _
      $region20: #{tpu_custom_call.1} parent=11 // pred_fallthru
        _
      // Predicated region
      $region21: #{tpu_custom_call.1} parent=11 // pred_check
        %p307 = pneg %p134
      $region22: #{tpu_custom_call.1} parent=11 // pred_check_branch
        %309 = sbr.rel (%p307) target = $region24
      $region23: #{tpu_custom_call.1} parent=11 // pred_region
        _
      $region24: #{tpu_custom_call.1} parent=11 // pred_fallthru
        _
      // Predicated region
      $region25: #{tpu_custom_call.1} parent=11 // pred_check
        %p310 = pneg %p155
      $region26: #{tpu_custom_call.1} parent=11 // pred_check_branch
        %312 = sbr.rel (%p310) target = $region28
      $region27: #{tpu_custom_call.1} parent=11 // pred_region
        _
      $region28: #{tpu_custom_call.1} parent=11 // pred_fallthru
        _
      // Predicated region
      $region29: #{tpu_custom_call.1} parent=11 // pred_check
        %p313 = pneg %p176
      $region30: #{tpu_custom_call.1} parent=11 // pred_check_branch
        %315 = sbr.rel (%p313) target = $region32
      $region31: #{tpu_custom_call.1} parent=11 // pred_region
        _
      $region32: #{tpu_custom_call.1} parent=11 // pred_fallthru
        _
      // Predicated region
      $region33: #{tpu_custom_call.1} parent=11 // pred_check
        %p316 = pneg %p197
      $region34: #{tpu_custom_call.1} parent=11 // pred_check_branch
        %318 = sbr.rel (%p316) target = $region36
      $region35: #{tpu_custom_call.1} parent=11 // pred_region
        _
      $region36: #{tpu_custom_call.1} parent=11 // pred_fallthru
        _
      // Predicated region
      $region37: #{tpu_custom_call.1} parent=11 // pred_check
        %p319 = pneg %p218
      $region38: #{tpu_custom_call.1} parent=11 // pred_check_branch
        %321 = sbr.rel (%p319) target = $region40
      $region39: #{tpu_custom_call.1} parent=11 // pred_region
        _
      $region40: #{tpu_custom_call.1} parent=11 // pred_fallthru
        _
      // Predicated region
      $region41: #{tpu_custom_call.1} parent=11 // pred_check
        %p322 = pneg %p239
      $region42: #{tpu_custom_call.1} parent=11 // pred_check_branch
        %324 = sbr.rel (%p322) target = $region44
      $region43: #{tpu_custom_call.1} parent=11 // pred_region
        _
      $region44: #{tpu_custom_call.1} parent=11 // pred_fallthru
        _
      // Predicated region
      $region45: #{tpu_custom_call.1} parent=11 // pred_check
        %p325 = pneg %p260
      $region46: #{tpu_custom_call.1} parent=11 // pred_check_branch
        %327 = sbr.rel (%p325) target = $region48
      $region47: #{tpu_custom_call.1} parent=11 // pred_region
        _
      $region48: #{tpu_custom_call.1} parent=11 // pred_fallthru
        _
    $region12: #{tpu_custom_call.1} parent=5 // pred_fallthru
      _
    %p328 = scmp.lt.s32.totalorder %s19, 2
    // Predicated region
    $region49: #{tpu_custom_call.1} parent=5 // pred_check
      %p329 = pneg %p328
    $region50: #{tpu_custom_call.1} parent=5 // pred_check_branch
      %331 = sbr.rel (%p329) target = $region52
    $region51: #{tpu_custom_call.1} parent=5 // pred_region
      // Predicated region
      $region53: #{tpu_custom_call.1} parent=51 // pred_check
        %p332 = pneg %p39
      $region54: #{tpu_custom_call.1} parent=51 // pred_check_branch
        %334 = sbr.rel (%p332) target = $region56
      $region55: #{tpu_custom_call.1} parent=51 // pred_region
        %s335 = smul.u32 16, %s19
        %p336 = scmp.lt.s32.totalorder %s335, 31
        %s337 = scalar_select %p336, %s335, 31
        %s338 = smul.addr %s337, 8
        %s339 = scalar_lea.vmem %s0, %s338
        %s340 = smul.u32 16, %s19
      $region56: #{tpu_custom_call.1} parent=51 // pred_fallthru
        _
      // Predicated region
      $region57: #{tpu_custom_call.1} parent=51 // pred_check
        %p341 = pneg %p65
      $region58: #{tpu_custom_call.1} parent=51 // pred_check_branch
        %343 = sbr.rel (%p341) target = $region60
      $region59: #{tpu_custom_call.1} parent=51 // pred_region
        %s344 = smul.u32 16, %s19
        %p345 = scmp.lt.s32.totalorder %s344, 31
        %s346 = scalar_select %p345, %s344, 31
        %s347 = smul.addr %s346, 8
        %s348 = scalar_lea.vmem %s1, %s347
        %s349 = smul.u32 16, %s19
      $region60: #{tpu_custom_call.1} parent=51 // pred_fallthru
        _
    $region52: #{tpu_custom_call.1} parent=5 // pred_fallthru
      _
    %p350 = scmp.le.s32.totalorder 1, %s19
    %p351 = scmp.lt.s32.totalorder %s19, 3
    %p352 = pnand %p350, %p351
    %p353 = pneg %p352
    // Predicated region
    $region61: #{tpu_custom_call.1} parent=5 // pred_check
      _
    $region62: #{tpu_custom_call.1} parent=5 // pred_check_branch
      %355 = sbr.rel (%p352) target = $region64
    $region63: #{tpu_custom_call.1} parent=5 // pred_region
      %s356 = ssub.s32 %s19, 1
      %s357 = smul.u32 16, %s24
      %p358 = scmp.lt.s32.totalorder %s357, 31
      %s359 = scalar_select %p358, %s357, 31
      %s360 = smul.addr %s359, 8
      %s361 = scalar_lea.vmem %s0, %s360
      %p362 = pneg %p45
      %p363 = pneg %p42
      %s364 = smul.u32 16, %s24
      %p365 = scmp.lt.s32.totalorder %s364, 31
      %s366 = scalar_select %p365, %s364, 31
      %s367 = smul.addr %s366, 8
      %s368 = scalar_lea.vmem %s1, %s367
      %p369 = pneg %p71
      %p370 = pneg %p68
      %p371 = pneg %p92
      %p372 = pneg %p89
      %p373 = pneg %p113
      %p374 = pneg %p110
      %p375 = pneg %p134
      %p376 = pneg %p131
      %p377 = pneg %p155
      %p378 = pneg %p152
      %p379 = pneg %p176
      %p380 = pneg %p173
      %p381 = pneg %p197
      %p382 = pneg %p194
      %p383 = pneg %p218
      %p384 = pneg %p215
      %p385 = pneg %p239
      %p386 = pneg %p236
      %p387 = pneg %p260
      %p388 = pneg %p257
      %p389 = pneg %p286
      %p390 = pneg %p283
      %s391 = smul.u32 16, %s24
      %p392 = scmp.lt.s32.totalorder %s391, 31
      %s393 = scalar_select %p392, %s391, 31
      %s394 = smul.addr %s393, 8
      %s395 = scalar_lea.vmem %s11, %s394
      %s396 = smul.u32 16, %s24
      %p397 = scmp.lt.s32.totalorder %s396, 31
      %s398 = scalar_select %p397, %s396, 31
      %s399 = smul.addr %s398, 8
      %s400 = scalar_lea.vmem %s0, %s399
      %s401 = smul.u32 16, %s24
      %s402 = smul.u32 16, %s24
      %p403 = scmp.lt.s32.totalorder %s402, 31
      %s404 = scalar_select %p403, %s402, 31
      %s405 = smul.addr %s404, 8
      %s406 = scalar_lea.vmem %s1, %s405
      %s407 = smul.u32 16, %s24
      %s408 = smul.u32 16, %s24
      %p409 = scmp.lt.s32.totalorder %s408, 31
      %s410 = scalar_select %p409, %s408, 31
      %s411 = smul.addr %s410, 8
      %s412 = scalar_lea.vmem %s11, %s411
      %s413 = smul.u32 16, %s24
      %v414 = vld [vmem:[%s400] sm:$0xff]
      %v415 = vld [vmem:[%s400 + $0x8] sm:$0xff]
      %v416 = vld [vmem:[%s400 + $0x10] sm:$0xff]
      %v417 = vld [vmem:[%s400 + $0x18] sm:$0xff]
      %v418 = vld [vmem:[%s400 + $0x20] sm:$0xff]
      %v419 = vld [vmem:[%s400 + $0x28] sm:$0xff]
      %v420 = vld [vmem:[%s400 + $0x30] sm:$0xff]
      %v421 = vld [vmem:[%s400 + $0x38] sm:$0xff]
      %v422 = vld [vmem:[%s400 + $0x40] sm:$0xff]
      %v423 = vld [vmem:[%s400 + $0x48] sm:$0xff]
      %v424 = vld [vmem:[%s400 + $0x50] sm:$0xff]
      %v425 = vld [vmem:[%s400 + $0x58] sm:$0xff]
      %v426 = vld [vmem:[%s400 + $0x60] sm:$0xff]
      %v427 = vld [vmem:[%s400 + $0x68] sm:$0xff]
      %v428 = vld [vmem:[%s400 + $0x70] sm:$0xff]
      %v429 = vld [vmem:[%s400 + $0x78] sm:$0xff]
      %v430 = vld [vmem:[%s406] sm:$0xff]
      %v431 = vld [vmem:[%s406 + $0x8] sm:$0xff]
      %v432 = vld [vmem:[%s406 + $0x10] sm:$0xff]
      %v433 = vld [vmem:[%s406 + $0x18] sm:$0xff]
      %v434 = vld [vmem:[%s406 + $0x20] sm:$0xff]
      %v435 = vld [vmem:[%s406 + $0x28] sm:$0xff]
      %v436 = vld [vmem:[%s406 + $0x30] sm:$0xff]
      %v437 = vld [vmem:[%s406 + $0x38] sm:$0xff]
      %v438 = vld [vmem:[%s406 + $0x40] sm:$0xff]
      %v439 = vld [vmem:[%s406 + $0x48] sm:$0xff]
      %v440 = vld [vmem:[%s406 + $0x50] sm:$0xff]
      %v441 = vld [vmem:[%s406 + $0x58] sm:$0xff]
      %v442 = vld [vmem:[%s406 + $0x60] sm:$0xff]
      %v443 = vld [vmem:[%s406 + $0x68] sm:$0xff]
      %v444 = vld [vmem:[%s406 + $0x70] sm:$0xff]
      %v445 = vld [vmem:[%s406 + $0x78] sm:$0xff]
      %v446 = vmul.f32 %v414, %v414
      %v447 = vmul.f32 %v415, %v415
      %v448 = vmul.f32 %v416, %v416
      %v449 = vmul.f32 %v417, %v417
      %v450 = vmul.f32 %v418, %v418
      %v451 = vmul.f32 %v419, %v419
      %v452 = vmul.f32 %v420, %v420
      %v453 = vmul.f32 %v421, %v421
      %v454 = vmul.f32 %v422, %v422
      %v455 = vmul.f32 %v423, %v423
      %v456 = vmul.f32 %v424, %v424
      %v457 = vmul.f32 %v425, %v425
      %v458 = vmul.f32 %v426, %v426
      %v459 = vmul.f32 %v427, %v427
      %v460 = vmul.f32 %v428, %v428
      %v461 = vmul.f32 %v429, %v429
      %vm462 = vcmask 130048
      %v463 = vsel %vm462, %v446, 0.0
      %464 = vadd.xlane.f32.xlu0 %v463
      %v465 = vpop.xlane.xlu0 %464
      %v466 = vsel %vm462, %v447, 0.0
      %467 = vadd.xlane.f32.xlu0 %v466
      %v468 = vpop.xlane.xlu0 %467
      %v469 = vsel %vm462, %v448, 0.0
      %470 = vadd.xlane.f32.xlu0 %v469
      %v471 = vpop.xlane.xlu0 %470
      %v472 = vsel %vm462, %v449, 0.0
      %473 = vadd.xlane.f32.xlu0 %v472
      %v474 = vpop.xlane.xlu0 %473
      %v475 = vsel %vm462, %v450, 0.0
      %476 = vadd.xlane.f32.xlu0 %v475
      %v477 = vpop.xlane.xlu0 %476
      %v478 = vsel %vm462, %v451, 0.0
      %479 = vadd.xlane.f32.xlu0 %v478
      %v480 = vpop.xlane.xlu0 %479
      %v481 = vsel %vm462, %v452, 0.0
      %482 = vadd.xlane.f32.xlu0 %v481
      %v483 = vpop.xlane.xlu0 %482
      %v484 = vsel %vm462, %v453, 0.0
      %485 = vadd.xlane.f32.xlu0 %v484
      %v486 = vpop.xlane.xlu0 %485
      %v487 = vsel %vm462, %v454, 0.0
      %488 = vadd.xlane.f32.xlu0 %v487
      %v489 = vpop.xlane.xlu0 %488
      %v490 = vsel %vm462, %v455, 0.0
      %491 = vadd.xlane.f32.xlu0 %v490
      %v492 = vpop.xlane.xlu0 %491
      %v493 = vsel %vm462, %v456, 0.0
      %494 = vadd.xlane.f32.xlu0 %v493
      %v495 = vpop.xlane.xlu0 %494
      %v496 = vsel %vm462, %v457, 0.0
      %497 = vadd.xlane.f32.xlu0 %v496
      %v498 = vpop.xlane.xlu0 %497
      %v499 = vsel %vm462, %v458, 0.0
      %500 = vadd.xlane.f32.xlu0 %v499
      %v501 = vpop.xlane.xlu0 %500
      %v502 = vsel %vm462, %v459, 0.0
      %503 = vadd.xlane.f32.xlu0 %v502
      %v504 = vpop.xlane.xlu0 %503
      %v505 = vsel %vm462, %v460, 0.0
      %506 = vadd.xlane.f32.xlu0 %v505
      %v507 = vpop.xlane.xlu0 %506
      %v508 = vsel %vm462, %v461, 0.0
      %509 = vadd.xlane.f32.xlu0 %v508
      %v510 = vpop.xlane.xlu0 %509
      %v511 = vmul.f32 %v414, %v430
      %v512 = vmul.f32 %v415, %v431
      %v513 = vmul.f32 %v416, %v432
      %v514 = vmul.f32 %v417, %v433
      %v515 = vmul.f32 %v418, %v434
      %v516 = vmul.f32 %v419, %v435
      %v517 = vmul.f32 %v420, %v436
      %v518 = vmul.f32 %v421, %v437
      %v519 = vmul.f32 %v422, %v438
      %v520 = vmul.f32 %v423, %v439
      %v521 = vmul.f32 %v424, %v440
      %v522 = vmul.f32 %v425, %v441
      %v523 = vmul.f32 %v426, %v442
      %v524 = vmul.f32 %v427, %v443
      %v525 = vmul.f32 %v428, %v444
      %v526 = vmul.f32 %v429, %v445
      %v527 = vsel %vm462, %v511, 0.0
      %528 = vadd.xlane.f32.xlu0 %v527
      %v529 = vpop.xlane.xlu0 %528
      %v530 = vsel %vm462, %v512, 0.0
      %531 = vadd.xlane.f32.xlu0 %v530
      %v532 = vpop.xlane.xlu0 %531
      %v533 = vsel %vm462, %v513, 0.0
      %534 = vadd.xlane.f32.xlu0 %v533
      %v535 = vpop.xlane.xlu0 %534
      %v536 = vsel %vm462, %v514, 0.0
      %537 = vadd.xlane.f32.xlu0 %v536
      %v538 = vpop.xlane.xlu0 %537
      %v539 = vsel %vm462, %v515, 0.0
      %540 = vadd.xlane.f32.xlu0 %v539
      %v541 = vpop.xlane.xlu0 %540
      %v542 = vsel %vm462, %v516, 0.0
      %543 = vadd.xlane.f32.xlu0 %v542
      %v544 = vpop.xlane.xlu0 %543
      %v545 = vsel %vm462, %v517, 0.0
      %546 = vadd.xlane.f32.xlu0 %v545
      %v547 = vpop.xlane.xlu0 %546
      %v548 = vsel %vm462, %v518, 0.0
      %549 = vadd.xlane.f32.xlu0 %v548
      %v550 = vpop.xlane.xlu0 %549
      %v551 = vsel %vm462, %v519, 0.0
      %552 = vadd.xlane.f32.xlu0 %v551
      %v553 = vpop.xlane.xlu0 %552
      %v554 = vsel %vm462, %v520, 0.0
      %555 = vadd.xlane.f32.xlu0 %v554
      %v556 = vpop.xlane.xlu0 %555
      %v557 = vsel %vm462, %v521, 0.0
      %558 = vadd.xlane.f32.xlu0 %v557
      %v559 = vpop.xlane.xlu0 %558
      %v560 = vsel %vm462, %v522, 0.0
      %561 = vadd.xlane.f32.xlu0 %v560
      %v562 = vpop.xlane.xlu0 %561
      %v563 = vsel %vm462, %v523, 0.0
      %564 = vadd.xlane.f32.xlu0 %v563
      %v565 = vpop.xlane.xlu0 %564
      %v566 = vsel %vm462, %v524, 0.0
      %567 = vadd.xlane.f32.xlu0 %v566
      %v568 = vpop.xlane.xlu0 %567
      %v569 = vsel %vm462, %v525, 0.0
      %570 = vadd.xlane.f32.xlu0 %v569
      %v571 = vpop.xlane.xlu0 %570
      %v572 = vsel %vm462, %v526, 0.0
      %573 = vadd.xlane.f32.xlu0 %v572
      %v574 = vpop.xlane.xlu0 %573
      %v575 = vmul.f32 %v430, %v430
      %v576 = vmul.f32 %v431, %v431
      %v577 = vmul.f32 %v432, %v432
      %v578 = vmul.f32 %v433, %v433
      %v579 = vmul.f32 %v434, %v434
      %v580 = vmul.f32 %v435, %v435
      %v581 = vmul.f32 %v436, %v436
      %v582 = vmul.f32 %v437, %v437
      %v583 = vmul.f32 %v438, %v438
      %v584 = vmul.f32 %v439, %v439
      %v585 = vmul.f32 %v440, %v440
      %v586 = vmul.f32 %v441, %v441
      %v587 = vmul.f32 %v442, %v442
      %v588 = vmul.f32 %v443, %v443
      %v589 = vmul.f32 %v444, %v444
      %v590 = vmul.f32 %v445, %v445
      %v591 = vsel %vm462, %v575, 0.0
      %592 = vadd.xlane.f32.xlu0 %v591
      %v593 = vpop.xlane.xlu0 %592
      %v594 = vsel %vm462, %v576, 0.0
      %595 = vadd.xlane.f32.xlu0 %v594
      %v596 = vpop.xlane.xlu0 %595
      %v597 = vsel %vm462, %v577, 0.0
      %598 = vadd.xlane.f32.xlu0 %v597
      %v599 = vpop.xlane.xlu0 %598
      %v600 = vsel %vm462, %v578, 0.0
      %601 = vadd.xlane.f32.xlu0 %v600
      %v602 = vpop.xlane.xlu0 %601
      %v603 = vsel %vm462, %v579, 0.0
      %604 = vadd.xlane.f32.xlu0 %v603
      %v605 = vpop.xlane.xlu0 %604
      %v606 = vsel %vm462, %v580, 0.0
      %607 = vadd.xlane.f32.xlu0 %v606
      %v608 = vpop.xlane.xlu0 %607
      %v609 = vsel %vm462, %v581, 0.0
      %610 = vadd.xlane.f32.xlu0 %v609
      %v611 = vpop.xlane.xlu0 %610
      %v612 = vsel %vm462, %v582, 0.0
      %613 = vadd.xlane.f32.xlu0 %v612
      %v614 = vpop.xlane.xlu0 %613
      %v615 = vsel %vm462, %v583, 0.0
      %616 = vadd.xlane.f32.xlu0 %v615
      %v617 = vpop.xlane.xlu0 %616
      %v618 = vsel %vm462, %v584, 0.0
      %619 = vadd.xlane.f32.xlu0 %v618
      %v620 = vpop.xlane.xlu0 %619
      %v621 = vsel %vm462, %v585, 0.0
      %622 = vadd.xlane.f32.xlu0 %v621
      %v623 = vpop.xlane.xlu0 %622
      %v624 = vsel %vm462, %v586, 0.0
      %625 = vadd.xlane.f32.xlu0 %v624
      %v626 = vpop.xlane.xlu0 %625
      %v627 = vsel %vm462, %v587, 0.0
      %628 = vadd.xlane.f32.xlu0 %v627
      %v629 = vpop.xlane.xlu0 %628
      %v630 = vsel %vm462, %v588, 0.0
      %631 = vadd.xlane.f32.xlu0 %v630
      %v632 = vpop.xlane.xlu0 %631
      %v633 = vsel %vm462, %v589, 0.0
      %634 = vadd.xlane.f32.xlu0 %v633
      %v635 = vpop.xlane.xlu0 %634
      %v636 = vsel %vm462, %v590, 0.0
      %637 = vadd.xlane.f32.xlu0 %v636
      %v638 = vpop.xlane.xlu0 %637
      %v639 = vsel %vm462, %v414, 0.0
      %640 = vadd.xlane.f32.xlu0 %v639
      %v641 = vpop.xlane.xlu0 %640
      %v642 = vsel %vm462, %v415, 0.0
      %643 = vadd.xlane.f32.xlu0 %v642
      %v644 = vpop.xlane.xlu0 %643
      %v645 = vsel %vm462, %v416, 0.0
      %646 = vadd.xlane.f32.xlu0 %v645
      %v647 = vpop.xlane.xlu0 %646
      %v648 = vsel %vm462, %v417, 0.0
      %649 = vadd.xlane.f32.xlu0 %v648
      %v650 = vpop.xlane.xlu0 %649
      %v651 = vsel %vm462, %v418, 0.0
      %652 = vadd.xlane.f32.xlu0 %v651
      %v653 = vpop.xlane.xlu0 %652
      %v654 = vsel %vm462, %v419, 0.0
      %655 = vadd.xlane.f32.xlu0 %v654
      %v656 = vpop.xlane.xlu0 %655
      %v657 = vsel %vm462, %v420, 0.0
      %658 = vadd.xlane.f32.xlu0 %v657
      %v659 = vpop.xlane.xlu0 %658
      %v660 = vsel %vm462, %v421, 0.0
      %661 = vadd.xlane.f32.xlu0 %v660
      %v662 = vpop.xlane.xlu0 %661
      %v663 = vsel %vm462, %v422, 0.0
      %664 = vadd.xlane.f32.xlu0 %v663
      %v665 = vpop.xlane.xlu0 %664
      %v666 = vsel %vm462, %v423, 0.0
      %667 = vadd.xlane.f32.xlu0 %v666
      %v668 = vpop.xlane.xlu0 %667
      %v669 = vsel %vm462, %v424, 0.0
      %670 = vadd.xlane.f32.xlu0 %v669
      %v671 = vpop.xlane.xlu0 %670
      %v672 = vsel %vm462, %v425, 0.0
      %673 = vadd.xlane.f32.xlu0 %v672
      %v674 = vpop.xlane.xlu0 %673
      %v675 = vsel %vm462, %v426, 0.0
      %676 = vadd.xlane.f32.xlu0 %v675
      %v677 = vpop.xlane.xlu0 %676
      %v678 = vsel %vm462, %v427, 0.0
      %679 = vadd.xlane.f32.xlu0 %v678
      %v680 = vpop.xlane.xlu0 %679
      %v681 = vsel %vm462, %v428, 0.0
      %682 = vadd.xlane.f32.xlu0 %v681
      %v683 = vpop.xlane.xlu0 %682
      %v684 = vsel %vm462, %v429, 0.0
      %685 = vadd.xlane.f32.xlu0 %v684
      %v686 = vpop.xlane.xlu0 %685
      %v687 = vsel %vm462, %v430, 0.0
      %688 = vadd.xlane.f32.xlu0 %v687
      %v689 = vpop.xlane.xlu0 %688
      %v690 = vsel %vm462, %v431, 0.0
      %691 = vadd.xlane.f32.xlu0 %v690
      %v692 = vpop.xlane.xlu0 %691
      %v693 = vsel %vm462, %v432, 0.0
      %694 = vadd.xlane.f32.xlu0 %v693
      %v695 = vpop.xlane.xlu0 %694
      %v696 = vsel %vm462, %v433, 0.0
      %697 = vadd.xlane.f32.xlu0 %v696
      %v698 = vpop.xlane.xlu0 %697
      %v699 = vsel %vm462, %v434, 0.0
      %700 = vadd.xlane.f32.xlu0 %v699
      %v701 = vpop.xlane.xlu0 %700
      %v702 = vsel %vm462, %v435, 0.0
      %703 = vadd.xlane.f32.xlu0 %v702
      %v704 = vpop.xlane.xlu0 %703
      %v705 = vsel %vm462, %v436, 0.0
      %706 = vadd.xlane.f32.xlu0 %v705
      %v707 = vpop.xlane.xlu0 %706
      %v708 = vsel %vm462, %v437, 0.0
      %709 = vadd.xlane.f32.xlu0 %v708
      %v710 = vpop.xlane.xlu0 %709
      %v711 = vsel %vm462, %v438, 0.0
      %712 = vadd.xlane.f32.xlu0 %v711
      %v713 = vpop.xlane.xlu0 %712
      %v714 = vsel %vm462, %v439, 0.0
      %715 = vadd.xlane.f32.xlu0 %v714
      %v716 = vpop.xlane.xlu0 %715
      %v717 = vsel %vm462, %v440, 0.0
      %718 = vadd.xlane.f32.xlu0 %v717
      %v719 = vpop.xlane.xlu0 %718
      %v720 = vsel %vm462, %v441, 0.0
      %721 = vadd.xlane.f32.xlu0 %v720
      %v722 = vpop.xlane.xlu0 %721
      %v723 = vsel %vm462, %v442, 0.0
      %724 = vadd.xlane.f32.xlu0 %v723
      %v725 = vpop.xlane.xlu0 %724
      %v726 = vsel %vm462, %v443, 0.0
      %727 = vadd.xlane.f32.xlu0 %v726
      %v728 = vpop.xlane.xlu0 %727
      %v729 = vsel %vm462, %v444, 0.0
      %730 = vadd.xlane.f32.xlu0 %v729
      %v731 = vpop.xlane.xlu0 %730
      %v732 = vsel %vm462, %v445, 0.0
      %733 = vadd.xlane.f32.xlu0 %v732
      %v734 = vpop.xlane.xlu0 %733
      %v735 = vld [vmem:[%s2] sm:$0x3f]
      %v736 = vlaneseq
      %v737 = vshrl.u32 %v736, 7
      %v738 = vsub.s32 0, %v737
      %v739 = vrot.slane %v735, %v738
      %v740 = vmul.f32 %v465, %v739
      %v741 = vmul.f32 %v468, %v739
      %v742 = vmul.f32 %v471, %v739
      %v743 = vmul.f32 %v474, %v739
      %v744 = vmul.f32 %v477, %v739
      %v745 = vmul.f32 %v480, %v739
      %v746 = vmul.f32 %v483, %v739
      %v747 = vmul.f32 %v486, %v739
      %v748 = vmul.f32 %v489, %v739
      %v749 = vmul.f32 %v492, %v739
      %v750 = vmul.f32 %v495, %v739
      %v751 = vmul.f32 %v498, %v739
      %v752 = vmul.f32 %v501, %v739
      %v753 = vmul.f32 %v504, %v739
      %v754 = vmul.f32 %v507, %v739
      %v755 = vmul.f32 %v510, %v739
      %v756 = vlaneseq
      %v757 = vshrl.u32 %v756, 7
      %v758 = vsub.s32 1, %v757
      %v759 = vrot.slane %v735, %v758
      %v760 = vmul.f32 %v529, %v759
      %v761 = vmul.f32 %v532, %v759
      %v762 = vmul.f32 %v535, %v759
      %v763 = vmul.f32 %v538, %v759
      %v764 = vmul.f32 %v541, %v759
      %v765 = vmul.f32 %v544, %v759
      %v766 = vmul.f32 %v547, %v759
      %v767 = vmul.f32 %v550, %v759
      %v768 = vmul.f32 %v553, %v759
      %v769 = vmul.f32 %v556, %v759
      %v770 = vmul.f32 %v559, %v759
      %v771 = vmul.f32 %v562, %v759
      %v772 = vmul.f32 %v565, %v759
      %v773 = vmul.f32 %v568, %v759
      %v774 = vmul.f32 %v571, %v759
      %v775 = vmul.f32 %v574, %v759
      %v776 = vadd.f32 %v740, %v760
      %v777 = vadd.f32 %v741, %v761
      %v778 = vadd.f32 %v742, %v762
      %v779 = vadd.f32 %v743, %v763
      %v780 = vadd.f32 %v744, %v764
      %v781 = vadd.f32 %v745, %v765
      %v782 = vadd.f32 %v746, %v766
      %v783 = vadd.f32 %v747, %v767
      %v784 = vadd.f32 %v748, %v768
      %v785 = vadd.f32 %v749, %v769
      %v786 = vadd.f32 %v750, %v770
      %v787 = vadd.f32 %v751, %v771
      %v788 = vadd.f32 %v752, %v772
      %v789 = vadd.f32 %v753, %v773
      %v790 = vadd.f32 %v754, %v774
      %v791 = vadd.f32 %v755, %v775
      %v792 = vlaneseq
      %v793 = vshrl.u32 %v792, 7
      %v794 = vsub.s32 2, %v793
      %v795 = vrot.slane %v735, %v794
      %v796 = vmul.f32 %v593, %v795
      %v797 = vmul.f32 %v596, %v795
      %v798 = vmul.f32 %v599, %v795
      %v799 = vmul.f32 %v602, %v795
      %v800 = vmul.f32 %v605, %v795
      %v801 = vmul.f32 %v608, %v795
      %v802 = vmul.f32 %v611, %v795
      %v803 = vmul.f32 %v614, %v795
      %v804 = vmul.f32 %v617, %v795
      %v805 = vmul.f32 %v620, %v795
      %v806 = vmul.f32 %v623, %v795
      %v807 = vmul.f32 %v626, %v795
      %v808 = vmul.f32 %v629, %v795
      %v809 = vmul.f32 %v632, %v795
      %v810 = vmul.f32 %v635, %v795
      %v811 = vmul.f32 %v638, %v795
      %v812 = vadd.f32 %v776, %v796
      %v813 = vadd.f32 %v777, %v797
      %v814 = vadd.f32 %v778, %v798
      %v815 = vadd.f32 %v779, %v799
      %v816 = vadd.f32 %v780, %v800
      %v817 = vadd.f32 %v781, %v801
      %v818 = vadd.f32 %v782, %v802
      %v819 = vadd.f32 %v783, %v803
      %v820 = vadd.f32 %v784, %v804
      %v821 = vadd.f32 %v785, %v805
      %v822 = vadd.f32 %v786, %v806
      %v823 = vadd.f32 %v787, %v807
      %v824 = vadd.f32 %v788, %v808
      %v825 = vadd.f32 %v789, %v809
      %v826 = vadd.f32 %v790, %v810
      %v827 = vadd.f32 %v791, %v811
      %v828 = vlaneseq
      %v829 = vshrl.u32 %v828, 7
      %v830 = vsub.s32 3, %v829
      %v831 = vrot.slane %v735, %v830
      %v832 = vmul.f32 %v641, %v831
      %v833 = vmul.f32 %v644, %v831
      %v834 = vmul.f32 %v647, %v831
      %v835 = vmul.f32 %v650, %v831
      %v836 = vmul.f32 %v653, %v831
      %v837 = vmul.f32 %v656, %v831
      %v838 = vmul.f32 %v659, %v831
      %v839 = vmul.f32 %v662, %v831
      %v840 = vmul.f32 %v665, %v831
      %v841 = vmul.f32 %v668, %v831
      %v842 = vmul.f32 %v671, %v831
      %v843 = vmul.f32 %v674, %v831
      %v844 = vmul.f32 %v677, %v831
      %v845 = vmul.f32 %v680, %v831
      %v846 = vmul.f32 %v683, %v831
      %v847 = vmul.f32 %v686, %v831
      %v848 = vadd.f32 %v812, %v832
      %v849 = vadd.f32 %v813, %v833
      %v850 = vadd.f32 %v814, %v834
      %v851 = vadd.f32 %v815, %v835
      %v852 = vadd.f32 %v816, %v836
      %v853 = vadd.f32 %v817, %v837
      %v854 = vadd.f32 %v818, %v838
      %v855 = vadd.f32 %v819, %v839
      %v856 = vadd.f32 %v820, %v840
      %v857 = vadd.f32 %v821, %v841
      %v858 = vadd.f32 %v822, %v842
      %v859 = vadd.f32 %v823, %v843
      %v860 = vadd.f32 %v824, %v844
      %v861 = vadd.f32 %v825, %v845
      %v862 = vadd.f32 %v826, %v846
      %v863 = vadd.f32 %v827, %v847
      %v864 = vlaneseq
      %v865 = vshrl.u32 %v864, 7
      %v866 = vsub.s32 4, %v865
      %v867 = vrot.slane %v735, %v866
      %v868 = vmul.f32 %v689, %v867
      %v869 = vmul.f32 %v692, %v867
      %v870 = vmul.f32 %v695, %v867
      %v871 = vmul.f32 %v698, %v867
      %v872 = vmul.f32 %v701, %v867
      %v873 = vmul.f32 %v704, %v867
      %v874 = vmul.f32 %v707, %v867
      %v875 = vmul.f32 %v710, %v867
      %v876 = vmul.f32 %v713, %v867
      %v877 = vmul.f32 %v716, %v867
      %v878 = vmul.f32 %v719, %v867
      %v879 = vmul.f32 %v722, %v867
      %v880 = vmul.f32 %v725, %v867
      %v881 = vmul.f32 %v728, %v867
      %v882 = vmul.f32 %v731, %v867
      %v883 = vmul.f32 %v734, %v867
      %v884 = vadd.f32 %v848, %v868
      %v885 = vadd.f32 %v849, %v869
      %v886 = vadd.f32 %v850, %v870
      %v887 = vadd.f32 %v851, %v871
      %v888 = vadd.f32 %v852, %v872
      %v889 = vadd.f32 %v853, %v873
      %v890 = vadd.f32 %v854, %v874
      %v891 = vadd.f32 %v855, %v875
      %v892 = vadd.f32 %v856, %v876
      %v893 = vadd.f32 %v857, %v877
      %v894 = vadd.f32 %v858, %v878
      %v895 = vadd.f32 %v859, %v879
      %v896 = vadd.f32 %v860, %v880
      %v897 = vadd.f32 %v861, %v881
      %v898 = vadd.f32 %v862, %v882
      %v899 = vadd.f32 %v863, %v883
      %v900 = vlaneseq
      %v901 = vshrl.u32 %v900, 7
      %v902 = vsub.s32 5, %v901
      %v903 = vrot.slane %v735, %v902
      %v904 = vadd.f32 %v884, %v903
      %v905 = vadd.f32 %v885, %v903
      %v906 = vadd.f32 %v886, %v903
      %v907 = vadd.f32 %v887, %v903
      %v908 = vadd.f32 %v888, %v903
      %v909 = vadd.f32 %v889, %v903
      %v910 = vadd.f32 %v890, %v903
      %v911 = vadd.f32 %v891, %v903
      %v912 = vadd.f32 %v892, %v903
      %v913 = vadd.f32 %v893, %v903
      %v914 = vadd.f32 %v894, %v903
      %v915 = vadd.f32 %v895, %v903
      %v916 = vadd.f32 %v896, %v903
      %v917 = vadd.f32 %v897, %v903
      %v918 = vadd.f32 %v898, %v903
      %v919 = vadd.f32 %v899, %v903
      %v920 = vld [vmem:[%s3] sm:$0x1]
      %v921 = vld [vmem:[%s4] sm:$0x1]
      %vm922 = vcmask 261120
      %v923 = vsel %vm922, %v904, 0.0
      %924 = vadd.xlane.f32.xlu0 %v923
      %v925 = vpop.xlane.xlu0 %924
      %v926 = vsel %vm922, %v905, 0.0
      %927 = vadd.xlane.f32.xlu0 %v926
      %v928 = vpop.xlane.xlu0 %927
      %v929 = vsel %vm922, %v906, 0.0
      %930 = vadd.xlane.f32.xlu0 %v929
      %v931 = vpop.xlane.xlu0 %930
      %v932 = vsel %vm922, %v907, 0.0
      %933 = vadd.xlane.f32.xlu0 %v932
      %v934 = vpop.xlane.xlu0 %933
      %v935 = vsel %vm922, %v908, 0.0
      %936 = vadd.xlane.f32.xlu0 %v935
      %v937 = vpop.xlane.xlu0 %936
      %v938 = vsel %vm922, %v909, 0.0
      %939 = vadd.xlane.f32.xlu0 %v938
      %v940 = vpop.xlane.xlu0 %939
      %v941 = vsel %vm922, %v910, 0.0
      %942 = vadd.xlane.f32.xlu0 %v941
      %v943 = vpop.xlane.xlu0 %942
      %v944 = vsel %vm922, %v911, 0.0
      %945 = vadd.xlane.f32.xlu0 %v944
      %v946 = vpop.xlane.xlu0 %945
      %v947 = vsel %vm922, %v912, 0.0
      %948 = vadd.xlane.f32.xlu0 %v947
      %v949 = vpop.xlane.xlu0 %948
      %v950 = vsel %vm922, %v913, 0.0
      %951 = vadd.xlane.f32.xlu0 %v950
      %v952 = vpop.xlane.xlu0 %951
      %v953 = vsel %vm922, %v914, 0.0
      %954 = vadd.xlane.f32.xlu0 %v953
      %v955 = vpop.xlane.xlu0 %954
      %v956 = vsel %vm922, %v915, 0.0
      %957 = vadd.xlane.f32.xlu0 %v956
      %v958 = vpop.xlane.xlu0 %957
      %v959 = vsel %vm922, %v916, 0.0
      %960 = vadd.xlane.f32.xlu0 %v959
      %v961 = vpop.xlane.xlu0 %960
      %v962 = vsel %vm922, %v917, 0.0
      %963 = vadd.xlane.f32.xlu0 %v962
      %v964 = vpop.xlane.xlu0 %963
      %v965 = vsel %vm922, %v918, 0.0
      %966 = vadd.xlane.f32.xlu0 %v965
      %v967 = vpop.xlane.xlu0 %966
      %v968 = vsel %vm922, %v919, 0.0
      %969 = vadd.xlane.f32.xlu0 %v968
      %v970 = vpop.xlane.xlu0 %969
      %v971 = vrcp.pop 32.0
      %v972 = vmul.f32 %v925, %v971
      %v973 = vmul.f32 %v928, %v971
      %v974 = vmul.f32 %v931, %v971
      %v975 = vmul.f32 %v934, %v971
      %v976 = vmul.f32 %v937, %v971
      %v977 = vmul.f32 %v940, %v971
      %v978 = vmul.f32 %v943, %v971
      %v979 = vmul.f32 %v946, %v971
      %v980 = vmul.f32 %v949, %v971
      %v981 = vmul.f32 %v952, %v971
      %v982 = vmul.f32 %v955, %v971
      %v983 = vmul.f32 %v958, %v971
      %v984 = vmul.f32 %v961, %v971
      %v985 = vmul.f32 %v964, %v971
      %v986 = vmul.f32 %v967, %v971
      %v987 = vmul.f32 %v970, %v971
      %v988 = vsub.f32 %v904, %v972
      %v989 = vsub.f32 %v905, %v973
      %v990 = vsub.f32 %v906, %v974
      %v991 = vsub.f32 %v907, %v975
      %v992 = vsub.f32 %v908, %v976
      %v993 = vsub.f32 %v909, %v977
      %v994 = vsub.f32 %v910, %v978
      %v995 = vsub.f32 %v911, %v979
      %v996 = vsub.f32 %v912, %v980
      %v997 = vsub.f32 %v913, %v981
      %v998 = vsub.f32 %v914, %v982
      %v999 = vsub.f32 %v915, %v983
      %v1000 = vsub.f32 %v916, %v984
      %v1001 = vsub.f32 %v917, %v985
      %v1002 = vsub.f32 %v918, %v986
      %v1003 = vsub.f32 %v919, %v987
      %v1004 = vmul.f32 %v988, %v988
      %v1005 = vmul.f32 %v989, %v989
      %v1006 = vmul.f32 %v990, %v990
      %v1007 = vmul.f32 %v991, %v991
      %v1008 = vmul.f32 %v992, %v992
      %v1009 = vmul.f32 %v993, %v993
      %v1010 = vmul.f32 %v994, %v994
      %v1011 = vmul.f32 %v995, %v995
      %v1012 = vmul.f32 %v996, %v996
      %v1013 = vmul.f32 %v997, %v997
      %v1014 = vmul.f32 %v998, %v998
      %v1015 = vmul.f32 %v999, %v999
      %v1016 = vmul.f32 %v1000, %v1000
      %v1017 = vmul.f32 %v1001, %v1001
      %v1018 = vmul.f32 %v1002, %v1002
      %v1019 = vmul.f32 %v1003, %v1003
      %v1020 = vsel %vm922, %v1004, 0.0
      %1021 = vadd.xlane.f32.xlu0 %v1020
      %v1022 = vpop.xlane.xlu0 %1021
      %v1023 = vsel %vm922, %v1005, 0.0
      %1024 = vadd.xlane.f32.xlu0 %v1023
      %v1025 = vpop.xlane.xlu0 %1024
      %v1026 = vsel %vm922, %v1006, 0.0
      %1027 = vadd.xlane.f32.xlu0 %v1026
      %v1028 = vpop.xlane.xlu0 %1027
      %v1029 = vsel %vm922, %v1007, 0.0
      %1030 = vadd.xlane.f32.xlu0 %v1029
      %v1031 = vpop.xlane.xlu0 %1030
      %v1032 = vsel %vm922, %v1008, 0.0
      %1033 = vadd.xlane.f32.xlu0 %v1032
      %v1034 = vpop.xlane.xlu0 %1033
      %v1035 = vsel %vm922, %v1009, 0.0
      %1036 = vadd.xlane.f32.xlu0 %v1035
      %v1037 = vpop.xlane.xlu0 %1036
      %v1038 = vsel %vm922, %v1010, 0.0
      %1039 = vadd.xlane.f32.xlu0 %v1038
      %v1040 = vpop.xlane.xlu0 %1039
      %v1041 = vsel %vm922, %v1011, 0.0
      %1042 = vadd.xlane.f32.xlu0 %v1041
      %v1043 = vpop.xlane.xlu0 %1042
      %v1044 = vsel %vm922, %v1012, 0.0
      %1045 = vadd.xlane.f32.xlu0 %v1044
      %v1046 = vpop.xlane.xlu0 %1045
      %v1047 = vsel %vm922, %v1013, 0.0
      %1048 = vadd.xlane.f32.xlu0 %v1047
      %v1049 = vpop.xlane.xlu0 %1048
      %v1050 = vsel %vm922, %v1014, 0.0
      %1051 = vadd.xlane.f32.xlu0 %v1050
      %v1052 = vpop.xlane.xlu0 %1051
      %v1053 = vsel %vm922, %v1015, 0.0
      %1054 = vadd.xlane.f32.xlu0 %v1053
      %v1055 = vpop.xlane.xlu0 %1054
      %v1056 = vsel %vm922, %v1016, 0.0
      %1057 = vadd.xlane.f32.xlu0 %v1056
      %v1058 = vpop.xlane.xlu0 %1057
      %v1059 = vsel %vm922, %v1017, 0.0
      %1060 = vadd.xlane.f32.xlu0 %v1059
      %v1061 = vpop.xlane.xlu0 %1060
      %v1062 = vsel %vm922, %v1018, 0.0
      %1063 = vadd.xlane.f32.xlu0 %v1062
      %v1064 = vpop.xlane.xlu0 %1063
      %v1065 = vsel %vm922, %v1019, 0.0
      %1066 = vadd.xlane.f32.xlu0 %v1065
      %v1067 = vpop.xlane.xlu0 %1066
      %v1068 = vmul.f32 %v1022, %v971
      %v1069 = vmul.f32 %v1025, %v971
      %v1070 = vmul.f32 %v1028, %v971
      %v1071 = vmul.f32 %v1031, %v971
      %v1072 = vmul.f32 %v1034, %v971
      %v1073 = vmul.f32 %v1037, %v971
      %v1074 = vmul.f32 %v1040, %v971
      %v1075 = vmul.f32 %v1043, %v971
      %v1076 = vmul.f32 %v1046, %v971
      %v1077 = vmul.f32 %v1049, %v971
      %v1078 = vmul.f32 %v1052, %v971
      %v1079 = vmul.f32 %v1055, %v971
      %v1080 = vmul.f32 %v1058, %v971
      %v1081 = vmul.f32 %v1061, %v971
      %v1082 = vmul.f32 %v1064, %v971
      %v1083 = vmul.f32 %v1067, %v971
      %v1084 = vadd.f32 %v1068, 1e-05
      %v1085 = vadd.f32 %v1069, 1e-05
      %v1086 = vadd.f32 %v1070, 1e-05
      %v1087 = vadd.f32 %v1071, 1e-05
      %v1088 = vadd.f32 %v1072, 1e-05
      %v1089 = vadd.f32 %v1073, 1e-05
      %v1090 = vadd.f32 %v1074, 1e-05
      %v1091 = vadd.f32 %v1075, 1e-05
      %v1092 = vadd.f32 %v1076, 1e-05
      %v1093 = vadd.f32 %v1077, 1e-05
      %v1094 = vadd.f32 %v1078, 1e-05
      %v1095 = vadd.f32 %v1079, 1e-05
      %v1096 = vadd.f32 %v1080, 1e-05
      %v1097 = vadd.f32 %v1081, 1e-05
      %v1098 = vadd.f32 %v1082, 1e-05
      %v1099 = vadd.f32 %v1083, 1e-05
      %v1100 = vrsqrt.pop %v1084
      %v1101 = vrsqrt.pop %v1085
      %v1102 = vrsqrt.pop %v1086
      %v1103 = vrsqrt.pop %v1087
      %v1104 = vrsqrt.pop %v1088
      %v1105 = vrsqrt.pop %v1089
      %v1106 = vrsqrt.pop %v1090
      %v1107 = vrsqrt.pop %v1091
      %v1108 = vrsqrt.pop %v1092
      %v1109 = vrsqrt.pop %v1093
      %v1110 = vrsqrt.pop %v1094
      %v1111 = vrsqrt.pop %v1095
      %v1112 = vrsqrt.pop %v1096
      %v1113 = vrsqrt.pop %v1097
      %v1114 = vrsqrt.pop %v1098
      %v1115 = vrsqrt.pop %v1099
      %v1116 = vmul.f32 %v988, %v1100
      %v1117 = vmul.f32 %v989, %v1101
      %v1118 = vmul.f32 %v990, %v1102
      %v1119 = vmul.f32 %v991, %v1103
      %v1120 = vmul.f32 %v992, %v1104
      %v1121 = vmul.f32 %v993, %v1105
      %v1122 = vmul.f32 %v994, %v1106
      %v1123 = vmul.f32 %v995, %v1107
      %v1124 = vmul.f32 %v996, %v1108
      %v1125 = vmul.f32 %v997, %v1109
      %v1126 = vmul.f32 %v998, %v1110
      %v1127 = vmul.f32 %v999, %v1111
      %v1128 = vmul.f32 %v1000, %v1112
      %v1129 = vmul.f32 %v1001, %v1113
      %v1130 = vmul.f32 %v1002, %v1114
      %v1131 = vmul.f32 %v1003, %v1115
      %v1133 = vlaneseq
      %v1134 = vshrl.u32 %v1133, 7
      %v1135 = vsub.s32 0, %v1134
      %v1136 = vrot.slane %v920, %v1135
      %v1138 = vmul.f32 %v1116, %v1136
      %v1139 = vmul.f32 %v1117, %v1136
      %v1140 = vmul.f32 %v1118, %v1136
      %v1141 = vmul.f32 %v1119, %v1136
      %v1142 = vmul.f32 %v1120, %v1136
      %v1143 = vmul.f32 %v1121, %v1136
      %v1144 = vmul.f32 %v1122, %v1136
      %v1145 = vmul.f32 %v1123, %v1136
      %v1146 = vmul.f32 %v1124, %v1136
      %v1147 = vmul.f32 %v1125, %v1136
      %v1148 = vmul.f32 %v1126, %v1136
      %v1149 = vmul.f32 %v1127, %v1136
      %v1150 = vmul.f32 %v1128, %v1136
      %v1151 = vmul.f32 %v1129, %v1136
      %v1152 = vmul.f32 %v1130, %v1136
      %v1153 = vmul.f32 %v1131, %v1136
      %v1155 = vlaneseq
      %v1156 = vshrl.u32 %v1155, 7
      %v1157 = vsub.s32 0, %v1156
      %v1158 = vrot.slane %v921, %v1157
      %v1160 = vadd.f32 %v1138, %v1158
      %v1161 = vadd.f32 %v1139, %v1158
      %v1162 = vadd.f32 %v1140, %v1158
      %v1163 = vadd.f32 %v1141, %v1158
      %v1164 = vadd.f32 %v1142, %v1158
      %v1165 = vadd.f32 %v1143, %v1158
      %v1166 = vadd.f32 %v1144, %v1158
      %v1167 = vadd.f32 %v1145, %v1158
      %v1168 = vadd.f32 %v1146, %v1158
      %v1169 = vadd.f32 %v1147, %v1158
      %v1170 = vadd.f32 %v1148, %v1158
      %v1171 = vadd.f32 %v1149, %v1158
      %v1172 = vadd.f32 %v1150, %v1158
      %v1173 = vadd.f32 %v1151, %v1158
      %v1174 = vadd.f32 %v1152, %v1158
      %v1175 = vadd.f32 %v1153, %v1158
      %v1176 = vmul.f32 %v1160, 0.5
      %v1177 = vmul.f32 %v1161, 0.5
      %v1178 = vmul.f32 %v1162, 0.5
      %v1179 = vmul.f32 %v1163, 0.5
      %v1180 = vmul.f32 %v1164, 0.5
      %v1181 = vmul.f32 %v1165, 0.5
      %v1182 = vmul.f32 %v1166, 0.5
      %v1183 = vmul.f32 %v1167, 0.5
      %v1184 = vmul.f32 %v1168, 0.5
      %v1185 = vmul.f32 %v1169, 0.5
      %v1186 = vmul.f32 %v1170, 0.5
      %v1187 = vmul.f32 %v1171, 0.5
      %v1188 = vmul.f32 %v1172, 0.5
      %v1189 = vmul.f32 %v1173, 0.5
      %v1190 = vmul.f32 %v1174, 0.5
      %v1191 = vmul.f32 %v1175, 0.5
      %v1192 = vmul.f32 %v1160, 0.70710677
      %v1193 = vmul.f32 %v1161, 0.70710677
      %v1194 = vmul.f32 %v1162, 0.70710677
      %v1195 = vmul.f32 %v1163, 0.70710677
      %v1196 = vmul.f32 %v1164, 0.70710677
      %v1197 = vmul.f32 %v1165, 0.70710677
      %v1198 = vmul.f32 %v1166, 0.70710677
      %v1199 = vmul.f32 %v1167, 0.70710677
      %v1200 = vmul.f32 %v1168, 0.70710677
      %v1201 = vmul.f32 %v1169, 0.70710677
      %v1202 = vmul.f32 %v1170, 0.70710677
      %v1203 = vmul.f32 %v1171, 0.70710677
      %v1204 = vmul.f32 %v1172, 0.70710677
      %v1205 = vmul.f32 %v1173, 0.70710677
      %v1206 = vmul.f32 %v1174, 0.70710677
      %v1207 = vmul.f32 %v1175, 0.70710677
      %v1208 = verf.f32.pop %v1192
      %v1209 = verf.f32.pop %v1193
      %v1210 = verf.f32.pop %v1194
      %v1211 = verf.f32.pop %v1195
      %v1212 = verf.f32.pop %v1196
      %v1213 = verf.f32.pop %v1197
      %v1214 = verf.f32.pop %v1198
      %v1215 = verf.f32.pop %v1199
      %v1216 = verf.f32.pop %v1200
      %v1217 = verf.f32.pop %v1201
      %v1218 = verf.f32.pop %v1202
      %v1219 = verf.f32.pop %v1203
      %v1220 = verf.f32.pop %v1204
      %v1221 = verf.f32.pop %v1205
      %v1222 = verf.f32.pop %v1206
      %v1223 = verf.f32.pop %v1207
      %v1224 = vadd.f32 %v1208, 1.0
      %v1225 = vadd.f32 %v1209, 1.0
      %v1226 = vadd.f32 %v1210, 1.0
      %v1227 = vadd.f32 %v1211, 1.0
      %v1228 = vadd.f32 %v1212, 1.0
      %v1229 = vadd.f32 %v1213, 1.0
      %v1230 = vadd.f32 %v1214, 1.0
      %v1231 = vadd.f32 %v1215, 1.0
      %v1232 = vadd.f32 %v1216, 1.0
      %v1233 = vadd.f32 %v1217, 1.0
      %v1234 = vadd.f32 %v1218, 1.0
      %v1235 = vadd.f32 %v1219, 1.0
      %v1236 = vadd.f32 %v1220, 1.0
      %v1237 = vadd.f32 %v1221, 1.0
      %v1238 = vadd.f32 %v1222, 1.0
      %v1239 = vadd.f32 %v1223, 1.0
      %v1240 = vmul.f32 %v1176, %v1224
      %v1241 = vmul.f32 %v1177, %v1225
      %v1242 = vmul.f32 %v1178, %v1226
      %v1243 = vmul.f32 %v1179, %v1227
      %v1244 = vmul.f32 %v1180, %v1228
      %v1245 = vmul.f32 %v1181, %v1229
      %v1246 = vmul.f32 %v1182, %v1230
      %v1247 = vmul.f32 %v1183, %v1231
      %v1248 = vmul.f32 %v1184, %v1232
      %v1249 = vmul.f32 %v1185, %v1233
      %v1250 = vmul.f32 %v1186, %v1234
      %v1251 = vmul.f32 %v1187, %v1235
      %v1252 = vmul.f32 %v1188, %v1236
      %v1253 = vmul.f32 %v1189, %v1237
      %v1254 = vmul.f32 %v1190, %v1238
      %v1255 = vmul.f32 %v1191, %v1239
      %v1256 = vld [vmem:[%s5] sm:$0xff]
      %v1257 = vld [vmem:[%s5 + $0x8] sm:$0xff]
      %v1258 = vld [vmem:[%s5 + $0x10] sm:$0xff]
      %v1259 = vld [vmem:[%s5 + $0x18] sm:$0xff]
      %v1260 = vld [vmem:[%s6] sm:$0x1]
      %v1262 = vlaneseq
      %v1263 = vshrl.u32 %v1262, 7
      %v1264 = vsub.s32 0, %v1263
      %v1265 = vrot.slane %v1260, %v1264
      %v1268 = vsel %vm922, %v1240, 0
      %v1271 = vsel %vm922, %v1241, 0
      %v1274 = vsel %vm922, %v1242, 0
      %v1277 = vsel %vm922, %v1243, 0
      %v1280 = vsel %vm922, %v1244, 0
      %v1283 = vsel %vm922, %v1245, 0
      %v1286 = vsel %vm922, %v1246, 0
      %v1289 = vsel %vm922, %v1247, 0
      %v1292 = vsel %vm922, %v1248, 0
      %v1295 = vsel %vm922, %v1249, 0
      %v1298 = vsel %vm922, %v1250, 0
      %v1301 = vsel %vm922, %v1251, 0
      %v1304 = vsel %vm922, %v1252, 0
      %v1307 = vsel %vm922, %v1253, 0
      %v1310 = vsel %vm922, %v1254, 0
      %v1313 = vsel %vm922, %v1255, 0
      %1315 = vmatprep.subr.mxu0 0.0
      %1316 = vmatpush1.msra.mxu0 0.0
      %1317 = vmatprep.subr.mxu0 0.0
      %1318 = vmatpush1.msra.mxu0 0.0
      %1319 = vmatprep.subr.mxu0 0.0
      %1320 = vmatpush1.msra.mxu0 0.0
      %1321 = vmatprep.subr.mxu0 0.0
      %1322 = vmatpush1.msra.mxu0 0.0
      %1323 = vmatprep.subr.mxu0 0.0
      %1324 = vmatpush1.msra.mxu0 0.0
      %1325 = vmatprep.subr.mxu0 0.0
      %1326 = vmatpush1.msra.mxu0 0.0
      %1327 = vmatprep.subr.mxu0 0.0
      %1328 = vmatpush1.msra.mxu0 0.0
      %1329 = vmatprep.subr.mxu0 0.0
      %1330 = vmatpush1.msra.mxu0 0.0
      %1331 = vmatprep.subr.mxu0 0.0
      %1332 = vmatpush1.msra.mxu0 0.0
      %1333 = vmatprep.subr.mxu0 0.0
      %1334 = vmatpush1.msra.mxu0 0.0
      %1335 = vmatprep.subr.mxu0 0.0
      %1336 = vmatpush1.msra.mxu0 0.0
      %1337 = vmatprep.subr.mxu0 0.0
      %1338 = vmatpush1.msra.mxu0 0.0
      %1339 = vmatprep.subr.mxu0 0.0
      %1340 = vmatpush1.msra.mxu0 %v1259
      %1341 = vmatprep.subr.mxu0 0.0
      %1342 = vmatpush1.msra.mxu0 %v1258
      %1343 = vmatprep.subr.mxu0 0.0
      %1344 = vmatpush1.msra.mxu0 %v1257
      %1345 = vmatprep.subr.mxu0 0.0
      %1346 = vmatpush1.msra.mxu0 %v1256
      %1347 = vmatprep.subr.mxu0 0.0
      %1348 = vmatpush2.msra.mxu0 0.0
      %1349 = vmatprep.subr.mxu0 0.0
      %1350 = vmatpush2.msra.mxu0 0.0
      %1351 = vmatprep.subr.mxu0 0.0
      %1352 = vmatpush2.msra.mxu0 0.0
      %1353 = vmatprep.subr.mxu0 0.0
      %1354 = vmatpush2.msra.mxu0 0.0
      %1355 = vmatprep.subr.mxu0 0.0
      %1356 = vmatpush2.msra.mxu0 0.0
      %1357 = vmatprep.subr.mxu0 0.0
      %1358 = vmatpush2.msra.mxu0 0.0
      %1359 = vmatprep.subr.mxu0 0.0
      %1360 = vmatpush2.msra.mxu0 0.0
      %1361 = vmatprep.subr.mxu0 0.0
      %1362 = vmatpush2.msra.mxu0 0.0
      %1363 = vmatprep.subr.mxu0 0.0
      %1364 = vmatpush2.msra.mxu0 0.0
      %1365 = vmatprep.subr.mxu0 0.0
      %1366 = vmatpush2.msra.mxu0 0.0
      %1367 = vmatprep.subr.mxu0 0.0
      %1368 = vmatpush2.msra.mxu0 0.0
      %1369 = vmatprep.subr.mxu0 0.0
      %1370 = vmatpush2.msra.mxu0 0.0
      %1371 = vmatprep.subr.mxu0 0.0
      %1372 = vmatpush2.msra.mxu0 0.0
      %1373 = vmatprep.subr.mxu0 0.0
      %1374 = vmatpush2.msra.mxu0 0.0
      %1375 = vmatprep.subr.mxu0 0.0
      %1376 = vmatpush2.msra.mxu0 0.0
      %1377 = vmatprep.subr.mxu0 0.0
      %1378 = vmatpush2.msra.mxu0 0.0
      %1379 = vmatprep.mubr.f32.mxu0 0.0
      %1380 = vmatmul.mubr.f32.gmra.mxu0 %v1268
      %v1381 = vpop.f32.mrf.mxu0
      %v1382 = vadd.f32 %v1265, %v1381
      %v1383 = vpop.f32.mrf.mxu0
      %1384 = vmatprep.mubr.f32.mxu0 0.0
      %1385 = vmatmul.mubr.f32.gmra.mxu0 %v1271
      %v1386 = vpop.f32.mrf.mxu0
      %v1387 = vadd.f32 %v1265, %v1386
      %v1388 = vpop.f32.mrf.mxu0
      %1389 = vmatprep.mubr.f32.mxu0 0.0
      %1390 = vmatmul.mubr.f32.gmra.mxu0 %v1274
      %v1391 = vpop.f32.mrf.mxu0
      %v1392 = vadd.f32 %v1265, %v1391
      %v1393 = vpop.f32.mrf.mxu0
      %1394 = vmatprep.mubr.f32.mxu0 0.0
      %1395 = vmatmul.mubr.f32.gmra.mxu0 %v1277
      %v1396 = vpop.f32.mrf.mxu0
      %v1397 = vadd.f32 %v1265, %v1396
      %v1398 = vpop.f32.mrf.mxu0
      %1399 = vmatprep.mubr.f32.mxu0 0.0
      %1400 = vmatmul.mubr.f32.gmra.mxu0 %v1280
      %v1401 = vpop.f32.mrf.mxu0
      %v1402 = vadd.f32 %v1265, %v1401
      %v1403 = vpop.f32.mrf.mxu0
      %1404 = vmatprep.mubr.f32.mxu0 0.0
      %1405 = vmatmul.mubr.f32.gmra.mxu0 %v1283
      %v1406 = vpop.f32.mrf.mxu0
      %v1407 = vadd.f32 %v1265, %v1406
      %v1408 = vpop.f32.mrf.mxu0
      %1409 = vmatprep.mubr.f32.mxu0 0.0
      %1410 = vmatmul.mubr.f32.gmra.mxu0 %v1286
      %v1411 = vpop.f32.mrf.mxu0
      %v1412 = vadd.f32 %v1265, %v1411
      %v1413 = vpop.f32.mrf.mxu0
      %1414 = vmatprep.mubr.f32.mxu0 0.0
      %1415 = vmatmul.mubr.f32.gmra.mxu0 %v1289
      %v1416 = vpop.f32.mrf.mxu0
      %v1417 = vadd.f32 %v1265, %v1416
      %v1418 = vpop.f32.mrf.mxu0
      %1419 = vmatprep.mubr.f32.mxu0 0.0
      %1420 = vmatmul.mubr.f32.gmra.mxu0 %v1292
      %v1421 = vpop.f32.mrf.mxu0
      %v1422 = vadd.f32 %v1265, %v1421
      %v1423 = vpop.f32.mrf.mxu0
      %1424 = vmatprep.mubr.f32.mxu0 0.0
      %1425 = vmatmul.mubr.f32.gmra.mxu0 %v1295
      %v1426 = vpop.f32.mrf.mxu0
      %v1427 = vadd.f32 %v1265, %v1426
      %v1428 = vpop.f32.mrf.mxu0
      %1429 = vmatprep.mubr.f32.mxu0 0.0
      %1430 = vmatmul.mubr.f32.gmra.mxu0 %v1298
      %v1431 = vpop.f32.mrf.mxu0
      %v1432 = vadd.f32 %v1265, %v1431
      %v1433 = vpop.f32.mrf.mxu0
      %1434 = vmatprep.mubr.f32.mxu0 0.0
      %1435 = vmatmul.mubr.f32.gmra.mxu0 %v1301
      %v1436 = vpop.f32.mrf.mxu0
      %v1437 = vadd.f32 %v1265, %v1436
      %v1438 = vpop.f32.mrf.mxu0
      %1439 = vmatprep.mubr.f32.mxu0 0.0
      %1440 = vmatmul.mubr.f32.gmra.mxu0 %v1304
      %v1441 = vpop.f32.mrf.mxu0
      %v1442 = vadd.f32 %v1265, %v1441
      %v1443 = vpop.f32.mrf.mxu0
      %1444 = vmatprep.mubr.f32.mxu0 0.0
      %1445 = vmatmul.mubr.f32.gmra.mxu0 %v1307
      %v1446 = vpop.f32.mrf.mxu0
      %v1447 = vadd.f32 %v1265, %v1446
      %v1448 = vpop.f32.mrf.mxu0
      %1449 = vmatprep.mubr.f32.mxu0 0.0
      %1450 = vmatmul.mubr.f32.gmra.mxu0 %v1310
      %v1451 = vpop.f32.mrf.mxu0
      %v1452 = vadd.f32 %v1265, %v1451
      %v1453 = vpop.f32.mrf.mxu0
      %1454 = vmatprep.mubr.f32.mxu0 0.0
      %1455 = vmatmul.mubr.f32.gmra.mxu0 %v1313
      %v1456 = vpop.f32.mrf.mxu0
      %v1457 = vadd.f32 %v1265, %v1456
      %v1458 = vpop.f32.mrf.mxu0
      %1459 = vdwg.mxu0
      %v1460 = vld [vmem:[%s7] sm:$0x1]
      %v1461 = vld [vmem:[%s8] sm:$0x1]
      %v1462 = vsel %vm462, %v1382, 0.0
      %1463 = vadd.xlane.f32.xlu0 %v1462
      %v1464 = vpop.xlane.xlu0 %1463
      %v1465 = vsel %vm462, %v1387, 0.0
      %1466 = vadd.xlane.f32.xlu0 %v1465
      %v1467 = vpop.xlane.xlu0 %1466
      %v1468 = vsel %vm462, %v1392, 0.0
      %1469 = vadd.xlane.f32.xlu0 %v1468
      %v1470 = vpop.xlane.xlu0 %1469
      %v1471 = vsel %vm462, %v1397, 0.0
      %1472 = vadd.xlane.f32.xlu0 %v1471
      %v1473 = vpop.xlane.xlu0 %1472
      %v1474 = vsel %vm462, %v1402, 0.0
      %1475 = vadd.xlane.f32.xlu0 %v1474
      %v1476 = vpop.xlane.xlu0 %1475
      %v1477 = vsel %vm462, %v1407, 0.0
      %1478 = vadd.xlane.f32.xlu0 %v1477
      %v1479 = vpop.xlane.xlu0 %1478
      %v1480 = vsel %vm462, %v1412, 0.0
      %1481 = vadd.xlane.f32.xlu0 %v1480
      %v1482 = vpop.xlane.xlu0 %1481
      %v1483 = vsel %vm462, %v1417, 0.0
      %1484 = vadd.xlane.f32.xlu0 %v1483
      %v1485 = vpop.xlane.xlu0 %1484
      %v1486 = vsel %vm462, %v1422, 0.0
      %1487 = vadd.xlane.f32.xlu0 %v1486
      %v1488 = vpop.xlane.xlu0 %1487
      %v1489 = vsel %vm462, %v1427, 0.0
      %1490 = vadd.xlane.f32.xlu0 %v1489
      %v1491 = vpop.xlane.xlu0 %1490
      %v1492 = vsel %vm462, %v1432, 0.0
      %1493 = vadd.xlane.f32.xlu0 %v1492
      %v1494 = vpop.xlane.xlu0 %1493
      %v1495 = vsel %vm462, %v1437, 0.0
      %1496 = vadd.xlane.f32.xlu0 %v1495
      %v1497 = vpop.xlane.xlu0 %1496
      %v1498 = vsel %vm462, %v1442, 0.0
      %1499 = vadd.xlane.f32.xlu0 %v1498
      %v1500 = vpop.xlane.xlu0 %1499
      %v1501 = vsel %vm462, %v1447, 0.0
      %1502 = vadd.xlane.f32.xlu0 %v1501
      %v1503 = vpop.xlane.xlu0 %1502
      %v1504 = vsel %vm462, %v1452, 0.0
      %1505 = vadd.xlane.f32.xlu0 %v1504
      %v1506 = vpop.xlane.xlu0 %1505
      %v1507 = vsel %vm462, %v1457, 0.0
      %1508 = vadd.xlane.f32.xlu0 %v1507
      %v1509 = vpop.xlane.xlu0 %1508
      %v1510 = vrcp.pop 16.0
      %v1511 = vmul.f32 %v1464, %v1510
      %v1512 = vmul.f32 %v1467, %v1510
      %v1513 = vmul.f32 %v1470, %v1510
      %v1514 = vmul.f32 %v1473, %v1510
      %v1515 = vmul.f32 %v1476, %v1510
      %v1516 = vmul.f32 %v1479, %v1510
      %v1517 = vmul.f32 %v1482, %v1510
      %v1518 = vmul.f32 %v1485, %v1510
      %v1519 = vmul.f32 %v1488, %v1510
      %v1520 = vmul.f32 %v1491, %v1510
      %v1521 = vmul.f32 %v1494, %v1510
      %v1522 = vmul.f32 %v1497, %v1510
      %v1523 = vmul.f32 %v1500, %v1510
      %v1524 = vmul.f32 %v1503, %v1510
      %v1525 = vmul.f32 %v1506, %v1510
      %v1526 = vmul.f32 %v1509, %v1510
      %v1527 = vsub.f32 %v1382, %v1511
      %v1528 = vsub.f32 %v1387, %v1512
      %v1529 = vsub.f32 %v1392, %v1513
      %v1530 = vsub.f32 %v1397, %v1514
      %v1531 = vsub.f32 %v1402, %v1515
      %v1532 = vsub.f32 %v1407, %v1516
      %v1533 = vsub.f32 %v1412, %v1517
      %v1534 = vsub.f32 %v1417, %v1518
      %v1535 = vsub.f32 %v1422, %v1519
      %v1536 = vsub.f32 %v1427, %v1520
      %v1537 = vsub.f32 %v1432, %v1521
      %v1538 = vsub.f32 %v1437, %v1522
      %v1539 = vsub.f32 %v1442, %v1523
      %v1540 = vsub.f32 %v1447, %v1524
      %v1541 = vsub.f32 %v1452, %v1525
      %v1542 = vsub.f32 %v1457, %v1526
      %v1543 = vmul.f32 %v1527, %v1527
      %v1544 = vmul.f32 %v1528, %v1528
      %v1545 = vmul.f32 %v1529, %v1529
      %v1546 = vmul.f32 %v1530, %v1530
      %v1547 = vmul.f32 %v1531, %v1531
      %v1548 = vmul.f32 %v1532, %v1532
      %v1549 = vmul.f32 %v1533, %v1533
      %v1550 = vmul.f32 %v1534, %v1534
      %v1551 = vmul.f32 %v1535, %v1535
      %v1552 = vmul.f32 %v1536, %v1536
      %v1553 = vmul.f32 %v1537, %v1537
      %v1554 = vmul.f32 %v1538, %v1538
      %v1555 = vmul.f32 %v1539, %v1539
      %v1556 = vmul.f32 %v1540, %v1540
      %v1557 = vmul.f32 %v1541, %v1541
      %v1558 = vmul.f32 %v1542, %v1542
      %v1559 = vsel %vm462, %v1543, 0.0
      %1560 = vadd.xlane.f32.xlu0 %v1559
      %v1561 = vpop.xlane.xlu0 %1560
      %v1562 = vsel %vm462, %v1544, 0.0
      %1563 = vadd.xlane.f32.xlu0 %v1562
      %v1564 = vpop.xlane.xlu0 %1563
      %v1565 = vsel %vm462, %v1545, 0.0
      %1566 = vadd.xlane.f32.xlu0 %v1565
      %v1567 = vpop.xlane.xlu0 %1566
      %v1568 = vsel %vm462, %v1546, 0.0
      %1569 = vadd.xlane.f32.xlu0 %v1568
      %v1570 = vpop.xlane.xlu0 %1569
      %v1571 = vsel %vm462, %v1547, 0.0
      %1572 = vadd.xlane.f32.xlu0 %v1571
      %v1573 = vpop.xlane.xlu0 %1572
      %v1574 = vsel %vm462, %v1548, 0.0
      %1575 = vadd.xlane.f32.xlu0 %v1574
      %v1576 = vpop.xlane.xlu0 %1575
      %v1577 = vsel %vm462, %v1549, 0.0
      %1578 = vadd.xlane.f32.xlu0 %v1577
      %v1579 = vpop.xlane.xlu0 %1578
      %v1580 = vsel %vm462, %v1550, 0.0
      %1581 = vadd.xlane.f32.xlu0 %v1580
      %v1582 = vpop.xlane.xlu0 %1581
      %v1583 = vsel %vm462, %v1551, 0.0
      %1584 = vadd.xlane.f32.xlu0 %v1583
      %v1585 = vpop.xlane.xlu0 %1584
      %v1586 = vsel %vm462, %v1552, 0.0
      %1587 = vadd.xlane.f32.xlu0 %v1586
      %v1588 = vpop.xlane.xlu0 %1587
      %v1589 = vsel %vm462, %v1553, 0.0
      %1590 = vadd.xlane.f32.xlu0 %v1589
      %v1591 = vpop.xlane.xlu0 %1590
      %v1592 = vsel %vm462, %v1554, 0.0
      %1593 = vadd.xlane.f32.xlu0 %v1592
      %v1594 = vpop.xlane.xlu0 %1593
      %v1595 = vsel %vm462, %v1555, 0.0
      %1596 = vadd.xlane.f32.xlu0 %v1595
      %v1597 = vpop.xlane.xlu0 %1596
      %v1598 = vsel %vm462, %v1556, 0.0
      %1599 = vadd.xlane.f32.xlu0 %v1598
      %v1600 = vpop.xlane.xlu0 %1599
      %v1601 = vsel %vm462, %v1557, 0.0
      %1602 = vadd.xlane.f32.xlu0 %v1601
      %v1603 = vpop.xlane.xlu0 %1602
      %v1604 = vsel %vm462, %v1558, 0.0
      %1605 = vadd.xlane.f32.xlu0 %v1604
      %v1606 = vpop.xlane.xlu0 %1605
      %v1607 = vmul.f32 %v1561, %v1510
      %v1608 = vmul.f32 %v1564, %v1510
      %v1609 = vmul.f32 %v1567, %v1510
      %v1610 = vmul.f32 %v1570, %v1510
      %v1611 = vmul.f32 %v1573, %v1510
      %v1612 = vmul.f32 %v1576, %v1510
      %v1613 = vmul.f32 %v1579, %v1510
      %v1614 = vmul.f32 %v1582, %v1510
      %v1615 = vmul.f32 %v1585, %v1510
      %v1616 = vmul.f32 %v1588, %v1510
      %v1617 = vmul.f32 %v1591, %v1510
      %v1618 = vmul.f32 %v1594, %v1510
      %v1619 = vmul.f32 %v1597, %v1510
      %v1620 = vmul.f32 %v1600, %v1510
      %v1621 = vmul.f32 %v1603, %v1510
      %v1622 = vmul.f32 %v1606, %v1510
      %v1623 = vadd.f32 %v1607, 1e-05
      %v1624 = vadd.f32 %v1608, 1e-05
      %v1625 = vadd.f32 %v1609, 1e-05
      %v1626 = vadd.f32 %v1610, 1e-05
      %v1627 = vadd.f32 %v1611, 1e-05
      %v1628 = vadd.f32 %v1612, 1e-05
      %v1629 = vadd.f32 %v1613, 1e-05
      %v1630 = vadd.f32 %v1614, 1e-05
      %v1631 = vadd.f32 %v1615, 1e-05
      %v1632 = vadd.f32 %v1616, 1e-05
      %v1633 = vadd.f32 %v1617, 1e-05
      %v1634 = vadd.f32 %v1618, 1e-05
      %v1635 = vadd.f32 %v1619, 1e-05
      %v1636 = vadd.f32 %v1620, 1e-05
      %v1637 = vadd.f32 %v1621, 1e-05
      %v1638 = vadd.f32 %v1622, 1e-05
      %v1639 = vrsqrt.pop %v1623
      %v1640 = vrsqrt.pop %v1624
      %v1641 = vrsqrt.pop %v1625
      %v1642 = vrsqrt.pop %v1626
      %v1643 = vrsqrt.pop %v1627
      %v1644 = vrsqrt.pop %v1628
      %v1645 = vrsqrt.pop %v1629
      %v1646 = vrsqrt.pop %v1630
      %v1647 = vrsqrt.pop %v1631
      %v1648 = vrsqrt.pop %v1632
      %v1649 = vrsqrt.pop %v1633
      %v1650 = vrsqrt.pop %v1634
      %v1651 = vrsqrt.pop %v1635
      %v1652 = vrsqrt.pop %v1636
      %v1653 = vrsqrt.pop %v1637
      %v1654 = vrsqrt.pop %v1638
      %v1655 = vmul.f32 %v1527, %v1639
      %v1656 = vmul.f32 %v1528, %v1640
      %v1657 = vmul.f32 %v1529, %v1641
      %v1658 = vmul.f32 %v1530, %v1642
      %v1659 = vmul.f32 %v1531, %v1643
      %v1660 = vmul.f32 %v1532, %v1644
      %v1661 = vmul.f32 %v1533, %v1645
      %v1662 = vmul.f32 %v1534, %v1646
      %v1663 = vmul.f32 %v1535, %v1647
      %v1664 = vmul.f32 %v1536, %v1648
      %v1665 = vmul.f32 %v1537, %v1649
      %v1666 = vmul.f32 %v1538, %v1650
      %v1667 = vmul.f32 %v1539, %v1651
      %v1668 = vmul.f32 %v1540, %v1652
      %v1669 = vmul.f32 %v1541, %v1653
      %v1670 = vmul.f32 %v1542, %v1654
      %v1672 = vlaneseq
      %v1673 = vshrl.u32 %v1672, 7
      %v1674 = vsub.s32 0, %v1673
      %v1675 = vrot.slane %v1460, %v1674
      %v1677 = vmul.f32 %v1655, %v1675
      %v1678 = vmul.f32 %v1656, %v1675
      %v1679 = vmul.f32 %v1657, %v1675
      %v1680 = vmul.f32 %v1658, %v1675
      %v1681 = vmul.f32 %v1659, %v1675
      %v1682 = vmul.f32 %v1660, %v1675
      %v1683 = vmul.f32 %v1661, %v1675
      %v1684 = vmul.f32 %v1662, %v1675
      %v1685 = vmul.f32 %v1663, %v1675
      %v1686 = vmul.f32 %v1664, %v1675
      %v1687 = vmul.f32 %v1665, %v1675
      %v1688 = vmul.f32 %v1666, %v1675
      %v1689 = vmul.f32 %v1667, %v1675
      %v1690 = vmul.f32 %v1668, %v1675
      %v1691 = vmul.f32 %v1669, %v1675
      %v1692 = vmul.f32 %v1670, %v1675
      %v1694 = vlaneseq
      %v1695 = vshrl.u32 %v1694, 7
      %v1696 = vsub.s32 0, %v1695
      %v1697 = vrot.slane %v1461, %v1696
      %v1699 = vadd.f32 %v1677, %v1697
      %v1700 = vadd.f32 %v1678, %v1697
      %v1701 = vadd.f32 %v1679, %v1697
      %v1702 = vadd.f32 %v1680, %v1697
      %v1703 = vadd.f32 %v1681, %v1697
      %v1704 = vadd.f32 %v1682, %v1697
      %v1705 = vadd.f32 %v1683, %v1697
      %v1706 = vadd.f32 %v1684, %v1697
      %v1707 = vadd.f32 %v1685, %v1697
      %v1708 = vadd.f32 %v1686, %v1697
      %v1709 = vadd.f32 %v1687, %v1697
      %v1710 = vadd.f32 %v1688, %v1697
      %v1711 = vadd.f32 %v1689, %v1697
      %v1712 = vadd.f32 %v1690, %v1697
      %v1713 = vadd.f32 %v1691, %v1697
      %v1714 = vadd.f32 %v1692, %v1697
      %v1715 = vmul.f32 %v1699, 0.5
      %v1716 = vmul.f32 %v1700, 0.5
      %v1717 = vmul.f32 %v1701, 0.5
      %v1718 = vmul.f32 %v1702, 0.5
      %v1719 = vmul.f32 %v1703, 0.5
      %v1720 = vmul.f32 %v1704, 0.5
      %v1721 = vmul.f32 %v1705, 0.5
      %v1722 = vmul.f32 %v1706, 0.5
      %v1723 = vmul.f32 %v1707, 0.5
      %v1724 = vmul.f32 %v1708, 0.5
      %v1725 = vmul.f32 %v1709, 0.5
      %v1726 = vmul.f32 %v1710, 0.5
      %v1727 = vmul.f32 %v1711, 0.5
      %v1728 = vmul.f32 %v1712, 0.5
      %v1729 = vmul.f32 %v1713, 0.5
      %v1730 = vmul.f32 %v1714, 0.5
      %v1731 = vmul.f32 %v1699, 0.70710677
      %v1732 = vmul.f32 %v1700, 0.70710677
      %v1733 = vmul.f32 %v1701, 0.70710677
      %v1734 = vmul.f32 %v1702, 0.70710677
      %v1735 = vmul.f32 %v1703, 0.70710677
      %v1736 = vmul.f32 %v1704, 0.70710677
      %v1737 = vmul.f32 %v1705, 0.70710677
      %v1738 = vmul.f32 %v1706, 0.70710677
      %v1739 = vmul.f32 %v1707, 0.70710677
      %v1740 = vmul.f32 %v1708, 0.70710677
      %v1741 = vmul.f32 %v1709, 0.70710677
      %v1742 = vmul.f32 %v1710, 0.70710677
      %v1743 = vmul.f32 %v1711, 0.70710677
      %v1744 = vmul.f32 %v1712, 0.70710677
      %v1745 = vmul.f32 %v1713, 0.70710677
      %v1746 = vmul.f32 %v1714, 0.70710677
      %v1747 = verf.f32.pop %v1731
      %v1748 = verf.f32.pop %v1732
      %v1749 = verf.f32.pop %v1733
      %v1750 = verf.f32.pop %v1734
      %v1751 = verf.f32.pop %v1735
      %v1752 = verf.f32.pop %v1736
      %v1753 = verf.f32.pop %v1737
      %v1754 = verf.f32.pop %v1738
      %v1755 = verf.f32.pop %v1739
      %v1756 = verf.f32.pop %v1740
      %v1757 = verf.f32.pop %v1741
      %v1758 = verf.f32.pop %v1742
      %v1759 = verf.f32.pop %v1743
      %v1760 = verf.f32.pop %v1744
      %v1761 = verf.f32.pop %v1745
      %v1762 = verf.f32.pop %v1746
      %v1763 = vadd.f32 %v1747, 1.0
      %v1764 = vadd.f32 %v1748, 1.0
      %v1765 = vadd.f32 %v1749, 1.0
      %v1766 = vadd.f32 %v1750, 1.0
      %v1767 = vadd.f32 %v1751, 1.0
      %v1768 = vadd.f32 %v1752, 1.0
      %v1769 = vadd.f32 %v1753, 1.0
      %v1770 = vadd.f32 %v1754, 1.0
      %v1771 = vadd.f32 %v1755, 1.0
      %v1772 = vadd.f32 %v1756, 1.0
      %v1773 = vadd.f32 %v1757, 1.0
      %v1774 = vadd.f32 %v1758, 1.0
      %v1775 = vadd.f32 %v1759, 1.0
      %v1776 = vadd.f32 %v1760, 1.0
      %v1777 = vadd.f32 %v1761, 1.0
      %v1778 = vadd.f32 %v1762, 1.0
      %v1779 = vmul.f32 %v1715, %v1763
      %v1780 = vmul.f32 %v1716, %v1764
      %v1781 = vmul.f32 %v1717, %v1765
      %v1782 = vmul.f32 %v1718, %v1766
      %v1783 = vmul.f32 %v1719, %v1767
      %v1784 = vmul.f32 %v1720, %v1768
      %v1785 = vmul.f32 %v1721, %v1769
      %v1786 = vmul.f32 %v1722, %v1770
      %v1787 = vmul.f32 %v1723, %v1771
      %v1788 = vmul.f32 %v1724, %v1772
      %v1789 = vmul.f32 %v1725, %v1773
      %v1790 = vmul.f32 %v1726, %v1774
      %v1791 = vmul.f32 %v1727, %v1775
      %v1792 = vmul.f32 %v1728, %v1776
      %v1793 = vmul.f32 %v1729, %v1777
      %v1794 = vmul.f32 %v1730, %v1778
      %v1795 = vld [vmem:[%s9] sm:$0x1]
      %v1797 = vlaneseq
      %v1798 = vshrl.u32 %v1797, 7
      %v1799 = vsub.s32 0, %v1798
      %v1800 = vrot.slane %v1795, %v1799
      %v1802 = vmul.f32 %v1779, %v1800
      %v1803 = vmul.f32 %v1780, %v1800
      %v1804 = vmul.f32 %v1781, %v1800
      %v1805 = vmul.f32 %v1782, %v1800
      %v1806 = vmul.f32 %v1783, %v1800
      %v1807 = vmul.f32 %v1784, %v1800
      %v1808 = vmul.f32 %v1785, %v1800
      %v1809 = vmul.f32 %v1786, %v1800
      %v1810 = vmul.f32 %v1787, %v1800
      %v1811 = vmul.f32 %v1788, %v1800
      %v1812 = vmul.f32 %v1789, %v1800
      %v1813 = vmul.f32 %v1790, %v1800
      %v1814 = vmul.f32 %v1791, %v1800
      %v1815 = vmul.f32 %v1792, %v1800
      %v1816 = vmul.f32 %v1793, %v1800
      %v1817 = vmul.f32 %v1794, %v1800
      %v1818 = vsel %vm462, %v1802, 0.0
      %1819 = vadd.xlane.f32.xlu0 %v1818
      %v1820 = vpop.xlane.xlu0 %1819
      %v1821 = vsel %vm462, %v1803, 0.0
      %1822 = vadd.xlane.f32.xlu0 %v1821
      %v1823 = vpop.xlane.xlu0 %1822
      %v1824 = vsel %vm462, %v1804, 0.0
      %1825 = vadd.xlane.f32.xlu0 %v1824
      %v1826 = vpop.xlane.xlu0 %1825
      %v1827 = vsel %vm462, %v1805, 0.0
      %1828 = vadd.xlane.f32.xlu0 %v1827
      %v1829 = vpop.xlane.xlu0 %1828
      %v1830 = vsel %vm462, %v1806, 0.0
      %1831 = vadd.xlane.f32.xlu0 %v1830
      %v1832 = vpop.xlane.xlu0 %1831
      %v1833 = vsel %vm462, %v1807, 0.0
      %1834 = vadd.xlane.f32.xlu0 %v1833
      %v1835 = vpop.xlane.xlu0 %1834
      %v1836 = vsel %vm462, %v1808, 0.0
      %1837 = vadd.xlane.f32.xlu0 %v1836
      %v1838 = vpop.xlane.xlu0 %1837
      %v1839 = vsel %vm462, %v1809, 0.0
      %1840 = vadd.xlane.f32.xlu0 %v1839
      %v1841 = vpop.xlane.xlu0 %1840
      %v1842 = vsel %vm462, %v1810, 0.0
      %1843 = vadd.xlane.f32.xlu0 %v1842
      %v1844 = vpop.xlane.xlu0 %1843
      %v1845 = vsel %vm462, %v1811, 0.0
      %1846 = vadd.xlane.f32.xlu0 %v1845
      %v1847 = vpop.xlane.xlu0 %1846
      %v1848 = vsel %vm462, %v1812, 0.0
      %1849 = vadd.xlane.f32.xlu0 %v1848
      %v1850 = vpop.xlane.xlu0 %1849
      %v1851 = vsel %vm462, %v1813, 0.0
      %1852 = vadd.xlane.f32.xlu0 %v1851
      %v1853 = vpop.xlane.xlu0 %1852
      %v1854 = vsel %vm462, %v1814, 0.0
      %1855 = vadd.xlane.f32.xlu0 %v1854
      %v1856 = vpop.xlane.xlu0 %1855
      %v1857 = vsel %vm462, %v1815, 0.0
      %1858 = vadd.xlane.f32.xlu0 %v1857
      %v1859 = vpop.xlane.xlu0 %1858
      %v1860 = vsel %vm462, %v1816, 0.0
      %1861 = vadd.xlane.f32.xlu0 %v1860
      %v1862 = vpop.xlane.xlu0 %1861
      %v1863 = vsel %vm462, %v1817, 0.0
      %1864 = vadd.xlane.f32.xlu0 %v1863
      %v1865 = vpop.xlane.xlu0 %1864
      %v1866 = vld [vmem:[#allocation2] sm:$0x1]
      %v1868 = vlaneseq
      %v1869 = vshrl.u32 %v1868, 7
      %v1870 = vsub.s32 0, %v1869
      %v1871 = vrot.slane %v1866, %v1870
      %v1873 = vadd.f32 %v1820, %v1871
      %v1874 = vadd.f32 %v1823, %v1871
      %v1875 = vadd.f32 %v1826, %v1871
      %v1876 = vadd.f32 %v1829, %v1871
      %v1877 = vadd.f32 %v1832, %v1871
      %v1878 = vadd.f32 %v1835, %v1871
      %v1879 = vadd.f32 %v1838, %v1871
      %v1880 = vadd.f32 %v1841, %v1871
      %v1881 = vadd.f32 %v1844, %v1871
      %v1882 = vadd.f32 %v1847, %v1871
      %v1883 = vadd.f32 %v1850, %v1871
      %v1884 = vadd.f32 %v1853, %v1871
      %v1885 = vadd.f32 %v1856, %v1871
      %v1886 = vadd.f32 %v1859, %v1871
      %v1887 = vadd.f32 %v1862, %v1871
      %v1888 = vadd.f32 %v1865, %v1871
      %vm1889 = vcmask 7168
      %1890 = vst.msk [vmem:[%s412] sm:$0xff] %vm1889, %v1873
      %1891 = vst.msk [vmem:[%s412 + $0x8] sm:$0xff] %vm1889, %v1874
      %1892 = vst.msk [vmem:[%s412 + $0x10] sm:$0xff] %vm1889, %v1875
      %1893 = vst.msk [vmem:[%s412 + $0x18] sm:$0xff] %vm1889, %v1876
      %1894 = vst.msk [vmem:[%s412 + $0x20] sm:$0xff] %vm1889, %v1877
      %1895 = vst.msk [vmem:[%s412 + $0x28] sm:$0xff] %vm1889, %v1878
      %1896 = vst.msk [vmem:[%s412 + $0x30] sm:$0xff] %vm1889, %v1879
      %1897 = vst.msk [vmem:[%s412 + $0x38] sm:$0xff] %vm1889, %v1880
      %1898 = vst.msk [vmem:[%s412 + $0x40] sm:$0xff] %vm1889, %v1881
      %1899 = vst.msk [vmem:[%s412 + $0x48] sm:$0xff] %vm1889, %v1882
      %1900 = vst.msk [vmem:[%s412 + $0x50] sm:$0xff] %vm1889, %v1883
      %1901 = vst.msk [vmem:[%s412 + $0x58] sm:$0xff] %vm1889, %v1884
      %1902 = vst.msk [vmem:[%s412 + $0x60] sm:$0xff] %vm1889, %v1885
      %1903 = vst.msk [vmem:[%s412 + $0x68] sm:$0xff] %vm1889, %v1886
      %1904 = vst.msk [vmem:[%s412 + $0x70] sm:$0xff] %vm1889, %v1887
      %1905 = vst.msk [vmem:[%s412 + $0x78] sm:$0xff] %vm1889, %v1888
      %s1906 = smul.u32 16, %s24
      %p1907 = scmp.lt.s32.totalorder %s1906, 31
      %s1908 = scalar_select %p1907, %s1906, 31
      %s1909 = smul.addr %s1908, 8
      %s1910 = scalar_lea.vmem %s11, %s1909
      // Predicated region
      $region65: #{tpu_custom_call.1} parent=63 // pred_check
        %p1911 = pneg %p283
      $region66: #{tpu_custom_call.1} parent=63 // pred_check_branch
        %1913 = sbr.rel (%p1911) target = $region68
      $region67: #{tpu_custom_call.1} parent=63 // pred_region
        %s1914 = smul.u32 16, %s24
      $region68: #{tpu_custom_call.1} parent=63 // pred_fallthru
        _
    $region64: #{tpu_custom_call.1} parent=5 // pred_fallthru
      _
    %p1915 = scmp.le.s32.totalorder 2, %s19
    // Predicated region
    $region69: #{tpu_custom_call.1} parent=5 // pred_check
      %p1916 = pneg %p1915
    $region70: #{tpu_custom_call.1} parent=5 // pred_check_branch
      %1918 = sbr.rel (%p1916) target = $region72
    $region71: #{tpu_custom_call.1} parent=5 // pred_region
      %s1919 = ssub.s32 %s19, 2
      // Predicated region
      $region73: #{tpu_custom_call.1} parent=71 // pred_check
        %p1920 = pneg %p289
      $region74: #{tpu_custom_call.1} parent=71 // pred_check_branch
        %1922 = sbr.rel (%p1920) target = $region76
      $region75: #{tpu_custom_call.1} parent=71 // pred_region
        %s1923 = smul.u32 16, %s25
        %p1924 = scmp.lt.s32.totalorder %s1923, 31
        %s1925 = scalar_select %p1924, %s1923, 31
        %s1926 = smul.addr %s1925, 8
        %s1927 = scalar_lea.vmem %s11, %s1926
      $region76: #{tpu_custom_call.1} parent=71 // pred_fallthru
        _
    $region72: #{tpu_custom_call.1} parent=5 // pred_fallthru
      _
  $region6: #{tpu_custom_call.1} parent=0 // loop_footer
    %s23 = sadd.s32 1, %s19
  $region7: #{tpu_custom_call.1} parent=0 // loop_footer_branch
    %18 = sbr.rel target = $region3
  $region8: #{tpu_custom_call.1} parent=0 // loop_exit
    _

</llo_original>
